<compile_context>
chip_gen: v7x
topology: tpu7x:2x2x1
jax: 0.10.0
libtpu: 0.0.40
codegen_flags: <defaults>
</compile_context>

<pallas_src>
import functools

import jax
import jax.numpy as jnp
from jax.experimental import pallas as pl
from jax.experimental.pallas import tpu as pltpu


def _round_up8(c):
    return ((c + 7) // 8) * 8


# ----------------------------------------------------------------------------
# Fused Pallas kernel: whole MattingNet forward for one batch element.
# ----------------------------------------------------------------------------
def _matting_fused_kernel(*args, W, use_ext_trimap):
    if use_ext_trimap:
        (img_ref, tri_ref, ml_ref, mr_ref,
         wt0, bt0, wt1, bt1, wm0, bm0, wm1, bm1, wf0, bf0, wf1, bf1,
         matte_ref, trip_ref, matteu_ref) = args
    else:
        (img_ref, ml_ref, mr_ref,
         wt0, bt0, wt1, bt1, wm0, bm0, wm1, bm1, wf0, bf0, wf1, bf1,
         matte_ref, trip_ref, matteu_ref) = args
        tri_ref = None

    f32 = jnp.float32
    HW = img_ref.shape[2]
    # Precomputed 0/1 lane masks (passed in, so no in-kernel iota/mod needed):
    mask_l = ml_ref[...]      # (1, HW): 0 where w == 0     (invalid read of w-1)
    mask_r = mr_ref[...]      # (1, HW): 0 where w == W - 1 (invalid read of w+1)

    def conv3x3(x, w_ref, b_ref):
        """3x3 same-conv as ONE K=9*Cin MXU contraction.

        x: (Cin, HW) f32 value; w_ref: (Cout_pad, 9*Cin); b_ref: (Cout_pad, 1).
        Returns (Cout_pad, HW) f32 with bias added (no activation).
        """
        cin = x.shape[0]
        # In-kernel zero padding of the flattened spatial axis by W+1 each side:
        # a shift of dy*W + dx then reads zeros whenever the row index leaves
        # [0, H); column wrap is handled by the dx masks below.
        pad = jnp.zeros((cin, W + 1), f32)
        xp = jnp.concatenate([pad, x, pad], axis=1)        # (cin, HW + 2W + 2)
        taps = []
        for dy in (-1, 0, 1):
            for dx in (-1, 0, 1):
                start = (W + 1) + dy * W + dx
                win = xp[:, start:start + HW]              # x[p + dy*W + dx]
                if dx == -1:
                    win = win * mask_l
                elif dx == 1:
                    win = win * mask_r
                taps.append(win)
        col = jnp.concatenate(taps, axis=0)                # (9*cin, HW) im2col
        y = jnp.dot(w_ref[...], col, preferred_element_type=f32)
        return y + b_ref[...]                              # bias broadcast over lanes

    img = img_ref[0].astype(f32)                           # (3, HW)

    # ---- tnet: trimap logits ----------------------------------------------
    h = jnp.maximum(conv3x3(img, wt0, bt0), 0.0)           # (16, HW)
    tri_logits = conv3x3(h, wt1, bt1)[:3, :]               # (3, HW)
    trip_ref[0] = tri_logits

    if use_ext_trimap:
        tri_in = tri_ref[0].astype(f32)                    # user-provided trimap
    else:
        m = jnp.max(tri_logits, axis=0, keepdims=True)     # channel softmax
        e = jnp.exp(tri_logits - m)
        tri_in = e / jnp.sum(e, axis=0, keepdims=True)

    cat6 = jnp.concatenate([img, tri_in], axis=0)          # (6, HW)

    # ---- mnet: coarse matte -------------------------------------------------
    h = jnp.maximum(conv3x3(cat6, wm0, bm0), 0.0)          # (16, HW)
    matte_u = jax.nn.sigmoid(conv3x3(h, wm1, bm1)[:1, :])  # (1, HW)
    matteu_ref[0] = matte_u

    # ---- fnet: fused matte --------------------------------------------------
    cat7 = jnp.concatenate([cat6, matte_u], axis=0)        # (7, HW)
    h = jnp.maximum(conv3x3(cat7, wf0, bf0), 0.0)          # (16, HW)
    matte = jax.nn.sigmoid(conv3x3(h, wf1, bf1)[:1, :])    # (1, HW)
    matte_ref[0] = matte


# ----------------------------------------------------------------------------
# Host-side weight packing: OIHW -> (Cout_pad, 9*Cin) matmul weight + bias col.
# ----------------------------------------------------------------------------
def _pack_conv(w_oihw, b):
    """Row order of the 9*Cin axis is (dy, dx, cin) to match the im2col taps.

    Cout is zero-padded to a multiple of 8 so every in-kernel sublane extent
    stays aligned; padded rows are sliced off inside the kernel.
    """
    cout, cin = w_oihw.shape[0], w_oihw.shape[1]
    wmat = jnp.transpose(w_oihw, (2, 3, 1, 0)).reshape(9 * cin, cout).T
    bcol = b.reshape(cout, 1)
    cpad = _round_up8(cout)
    if cpad > cout:
        wmat = jnp.concatenate(
            [wmat, jnp.zeros((cpad - cout, 9 * cin), wmat.dtype)], axis=0)
        bcol = jnp.concatenate(
            [bcol, jnp.zeros((cpad - cout, 1), bcol.dtype)], axis=0)
    return wmat.astype(jnp.float32), bcol.astype(jnp.float32)


# ----------------------------------------------------------------------------
# MattingNet forward (matches the PyTorch module's forward semantics)
# ----------------------------------------------------------------------------
def matting_net_forward(params, img_nchw, trimap_3_nchw=None):
    N, C, H, W = img_nchw.shape
    assert C == 3
    HW = H * W
    f32 = jnp.float32

    # Free row-major reshape NCHW -> (N, C, H*W); no transposes anywhere.
    x = img_nchw.reshape(N, C, HW).astype(f32)

    cols = jnp.arange(HW, dtype=jnp.int32) % W
    mask_l = (cols != 0).astype(f32).reshape(1, HW)
    mask_r = (cols != W - 1).astype(f32).reshape(1, HW)

    use_tri = trimap_3_nchw is not None

    inputs = [x]
    in_specs = [pl.BlockSpec((1, C, HW), lambda n: (n, 0, 0))]
    if use_tri:
        t = trimap_3_nchw.reshape(N, 3, HW).astype(f32)
        inputs.append(t)
        in_specs.append(pl.BlockSpec((1, 3, HW), lambda n: (n, 0, 0)))
    inputs += [mask_l, mask_r]
    in_specs += [pl.BlockSpec((1, HW), lambda n: (0, 0)),
                 pl.BlockSpec((1, HW), lambda n: (0, 0))]

    for name in ("tnet0", "tnet1", "mnet0", "mnet1", "fnet0", "fnet1"):
        wmat, bcol = _pack_conv(*params[name])
        inputs += [wmat, bcol]
        in_specs += [pl.BlockSpec(wmat.shape, lambda n: (0, 0)),
                     pl.BlockSpec(bcol.shape, lambda n: (0, 0))]

    kernel = functools.partial(_matting_fused_kernel, W=W,
                               use_ext_trimap=use_tri)

    out_shape = (jax.ShapeDtypeStruct((N, 1, HW), f32),   # pred_matte
                 jax.ShapeDtypeStruct((N, 3, HW), f32),   # pred_trimap_prob
                 jax.ShapeDtypeStruct((N, 1, HW), f32))   # pred_matte_u
    out_specs = (pl.BlockSpec((1, 1, HW), lambda n: (n, 0, 0)),
                 pl.BlockSpec((1, 3, HW), lambda n: (n, 0, 0)),
                 pl.BlockSpec((1, 1, HW), lambda n: (n, 0, 0)))

    matte, trip, matte_u = pl.pallas_call(
        kernel,
        out_shape=out_shape,
        grid=(N,),
        in_specs=in_specs,
        out_specs=out_specs,
        compiler_params=pltpu.CompilerParams(
            dimension_semantics=("parallel",)),
    )(*inputs)

    return (matte.reshape(N, 1, H, W),
            trip.reshape(N, 3, H, W),
            matte_u.reshape(N, 1, H, W))


# ----------------------------------------------------------------------------
# Parameter setup (deterministic, in-script) -- PyTorch-style OIHW weights.
# ----------------------------------------------------------------------------
def _init_conv(key, cin, cout):
    kw, kb = jax.random.split(key)
    scale = 1.0 / jnp.sqrt(9.0 * cin)
    w = jax.random.normal(kw, (cout, cin, 3, 3), jnp.float32) * scale
    b = jax.random.normal(kb, (cout,), jnp.float32) * 0.01
    return w, b


def init_matting_net_params(key, hidden=16):
    keys = jax.random.split(key, 6)
    return {
        "tnet0": _init_conv(keys[0], 3, hidden),    # img(3) -> hidden
        "tnet1": _init_conv(keys[1], hidden, 3),    # hidden -> trimap logits(3)
        "mnet0": _init_conv(keys[2], 6, hidden),    # concat(6) -> hidden
        "mnet1": _init_conv(keys[3], hidden, 1),    # hidden -> matte_u(1)
        "fnet0": _init_conv(keys[4], 7, hidden),    # concat+matte_u(7) -> hidden
        "fnet1": _init_conv(keys[5], hidden, 1),    # hidden -> matte(1)
    }


# ----------------------------------------------------------------------------
# Pure-JAX reference (for correctness check)
# ----------------------------------------------------------------------------
def _conv3x3_ref(x, w, b):
    y = jax.lax.conv_general_dilated(
        x, w, window_strides=(1, 1), padding="SAME",
        dimension_numbers=("NCHW", "OIHW", "NCHW"))
    return y + b.reshape(1, -1, 1, 1)


def matting_net_reference(params, img, trimap_3=None):
    h = jax.nn.relu(_conv3x3_ref(img, *params["tnet0"]))
    pred_trimap_prob = _conv3x3_ref(h, *params["tnet1"])
    pred_trimap_softmax = jax.nn.softmax(pred_trimap_prob, axis=1)
    concat = jnp.concatenate(
        [img, pred_trimap_softmax if trimap_3 is None else trimap_3], axis=1)
    h = jax.nn.relu(_conv3x3_ref(concat, *params["mnet0"]))
    pred_matte_u = jax.nn.sigmoid(_conv3x3_ref(h, *params["mnet1"]))
    h = jax.nn.relu(_conv3x3_ref(
        jnp.concatenate([concat, pred_matte_u], axis=1), *params["fnet0"]))
    pred_matte = jax.nn.sigmoid(_conv3x3_ref(h, *params["fnet1"]))
    return pred_matte, pred_trimap_prob, pred_matte_u


# ----------------------------------------------------------------------------
# Main
# ----------------------------------------------------------------------------
if __name__ == "__main__":
    key = jax.random.PRNGKey(0)
    k_img, k_tri, k_params = jax.random.split(key, 3)

    N, C, H, W = 2, 3, 16, 16
    img = jax.random.uniform(k_img, (N, C, H, W), jnp.float32)
    trimap = jax.nn.softmax(
        jax.random.normal(k_tri, (N, 3, H, W), jnp.float32), axis=1)
    params = init_matting_net_params(k_params, hidden=16)

    # --- default branch (trimap_3 is None) ---
    outs = jax.jit(matting_net_forward)(params, img)
    jax.block_until_ready(outs)
    pred_matte, pred_trimap_prob, pred_matte_u = outs

    assert pred_matte.shape == (N, 1, H, W)
    assert pred_trimap_prob.shape == (N, 3, H, W)
    assert pred_matte_u.shape == (N, 1, H, W)

    refs = matting_net_reference(params, img)
    for got, want in zip(outs, refs):
        assert bool(jnp.all(jnp.isfinite(got)))
        err = float(jnp.max(jnp.abs(got - want)))
        assert err < 2e-2, f"mismatch vs reference: max abs err {err}"

    # --- external-trimap branch (trimap_3 is not None) ---
    outs_t = jax.jit(matting_net_forward)(params, img, trimap)
    jax.block_until_ready(outs_t)
    refs_t = matting_net_reference(params, img, trimap)
    for got, want in zip(outs_t, refs_t):
        assert bool(jnp.all(jnp.isfinite(got)))
        err = float(jnp.max(jnp.abs(got - want)))
        assert err < 2e-2, f"trimap branch mismatch vs reference: max abs err {err}"

    print("KERNEL_OK")
</pallas_src>

<mosaic_0001>
module attributes {stable_mosaic.version = 11 : i64} {
  func.func @_matting_fused_kernel(%arg0: i32, %arg1: memref<1x3x256xf32, #tpu.memory_space<vmem>>, %arg2: memref<1x256xf32, #tpu.memory_space<vmem>>, %arg3: memref<1x256xf32, #tpu.memory_space<vmem>>, %arg4: memref<16x27xf32, #tpu.memory_space<vmem>>, %arg5: memref<16x1xf32, #tpu.memory_space<vmem>>, %arg6: memref<8x144xf32, #tpu.memory_space<vmem>>, %arg7: memref<8x1xf32, #tpu.memory_space<vmem>>, %arg8: memref<16x54xf32, #tpu.memory_space<vmem>>, %arg9: memref<16x1xf32, #tpu.memory_space<vmem>>, %arg10: memref<8x144xf32, #tpu.memory_space<vmem>>, %arg11: memref<8x1xf32, #tpu.memory_space<vmem>>, %arg12: memref<16x63xf32, #tpu.memory_space<vmem>>, %arg13: memref<16x1xf32, #tpu.memory_space<vmem>>, %arg14: memref<8x144xf32, #tpu.memory_space<vmem>>, %arg15: memref<8x1xf32, #tpu.memory_space<vmem>>, %arg16: memref<1x1x256xf32, #tpu.memory_space<vmem>>, %arg17: memref<1x3x256xf32, #tpu.memory_space<vmem>>, %arg18: memref<1x1x256xf32, #tpu.memory_space<vmem>>) attributes {dimension_semantics = [#tpu.dimension_semantics<parallel>], iteration_bounds = array<i64: 2>, scalar_prefetch = 0 : i64, scratch_operands = 0 : i64, tpu.core_type = #tpu.core_type<tc>, window_params = [{transform_indices = @transform_0, window_bounds = array<i64: 1, 3, 256>}, {pipeline_mode = #tpu.pipeline_mode<synchronous>, transform_indices = @transform_1, window_bounds = array<i64: 1, 256>}, {pipeline_mode = #tpu.pipeline_mode<synchronous>, transform_indices = @transform_2, window_bounds = array<i64: 1, 256>}, {pipeline_mode = #tpu.pipeline_mode<synchronous>, transform_indices = @transform_3, window_bounds = array<i64: 16, 27>}, {pipeline_mode = #tpu.pipeline_mode<synchronous>, transform_indices = @transform_4, window_bounds = array<i64: 16, 1>}, {pipeline_mode = #tpu.pipeline_mode<synchronous>, transform_indices = @transform_5, window_bounds = array<i64: 8, 144>}, {pipeline_mode = #tpu.pipeline_mode<synchronous>, transform_indices = @transform_6, window_bounds = array<i64: 8, 1>}, {pipeline_mode = #tpu.pipeline_mode<synchronous>, transform_indices = @transform_7, window_bounds = array<i64: 16, 54>}, {pipeline_mode = #tpu.pipeline_mode<synchronous>, transform_indices = @transform_8, window_bounds = array<i64: 16, 1>}, {pipeline_mode = #tpu.pipeline_mode<synchronous>, transform_indices = @transform_9, window_bounds = array<i64: 8, 144>}, {pipeline_mode = #tpu.pipeline_mode<synchronous>, transform_indices = @transform_10, window_bounds = array<i64: 8, 1>}, {pipeline_mode = #tpu.pipeline_mode<synchronous>, transform_indices = @transform_11, window_bounds = array<i64: 16, 63>}, {pipeline_mode = #tpu.pipeline_mode<synchronous>, transform_indices = @transform_12, window_bounds = array<i64: 16, 1>}, {pipeline_mode = #tpu.pipeline_mode<synchronous>, transform_indices = @transform_13, window_bounds = array<i64: 8, 144>}, {pipeline_mode = #tpu.pipeline_mode<synchronous>, transform_indices = @transform_14, window_bounds = array<i64: 8, 1>}, {transform_indices = @transform_15, window_bounds = array<i64: 1, 1, 256>}, {transform_indices = @transform_16, window_bounds = array<i64: 1, 3, 256>}, {transform_indices = @transform_17, window_bounds = array<i64: 1, 1, 256>}]} {
    %c0 = arith.constant 0 : index
    %c0_0 = arith.constant 0 : index
    %0 = vector.load %arg2[%c0, %c0_0] : memref<1x256xf32, #tpu.memory_space<vmem>>, vector<1x256xf32>
    %c0_1 = arith.constant 0 : index
    %c0_2 = arith.constant 0 : index
    %1 = vector.load %arg3[%c0_1, %c0_2] : memref<1x256xf32, #tpu.memory_space<vmem>>, vector<1x256xf32>
    %c0_3 = arith.constant 0 : index
    %c0_4 = arith.constant 0 : index
    %c0_5 = arith.constant 0 : index
    %2 = vector.load %arg1[%c0_3, %c0_4, %c0_5] : memref<1x3x256xf32, #tpu.memory_space<vmem>>, vector<1x3x256xf32>
    %3 = vector.shape_cast %2 : vector<1x3x256xf32> to vector<3x256xf32>
    %cst = arith.constant 0.000000e+00 : f32
    %4 = vector.broadcast %cst : f32 to vector<3x17xf32>
    %5 = tpu.concatenate %4, %3, %4 in 1 : vector<3x17xf32>, vector<3x256xf32>, vector<3x17xf32> -> vector<3x290xf32>
    %6 = vector.extract_strided_slice %5 {offsets = [0, 0], sizes = [3, 256], strides = [1, 1]} : vector<3x290xf32> to vector<3x256xf32>
    %7 = vector.broadcast %0 : vector<1x256xf32> to vector<3x256xf32>
    %8 = arith.mulf %6, %7 : vector<3x256xf32>
    %9 = vector.extract_strided_slice %5 {offsets = [0, 1], sizes = [3, 256], strides = [1, 1]} : vector<3x290xf32> to vector<3x256xf32>
    %10 = vector.extract_strided_slice %5 {offsets = [0, 2], sizes = [3, 256], strides = [1, 1]} : vector<3x290xf32> to vector<3x256xf32>
    %11 = vector.broadcast %1 : vector<1x256xf32> to vector<3x256xf32>
    %12 = arith.mulf %10, %11 : vector<3x256xf32>
    %13 = vector.extract_strided_slice %5 {offsets = [0, 16], sizes = [3, 256], strides = [1, 1]} : vector<3x290xf32> to vector<3x256xf32>
    %14 = vector.broadcast %0 : vector<1x256xf32> to vector<3x256xf32>
    %15 = arith.mulf %13, %14 : vector<3x256xf32>
    %16 = vector.extract_strided_slice %5 {offsets = [0, 17], sizes = [3, 256], strides = [1, 1]} : vector<3x290xf32> to vector<3x256xf32>
    %17 = vector.extract_strided_slice %5 {offsets = [0, 18], sizes = [3, 256], strides = [1, 1]} : vector<3x290xf32> to vector<3x256xf32>
    %18 = vector.broadcast %1 : vector<1x256xf32> to vector<3x256xf32>
    %19 = arith.mulf %17, %18 : vector<3x256xf32>
    %20 = vector.extract_strided_slice %5 {offsets = [0, 32], sizes = [3, 256], strides = [1, 1]} : vector<3x290xf32> to vector<3x256xf32>
    %21 = vector.broadcast %0 : vector<1x256xf32> to vector<3x256xf32>
    %22 = arith.mulf %20, %21 : vector<3x256xf32>
    %23 = vector.extract_strided_slice %5 {offsets = [0, 33], sizes = [3, 256], strides = [1, 1]} : vector<3x290xf32> to vector<3x256xf32>
    %24 = vector.extract_strided_slice %5 {offsets = [0, 34], sizes = [3, 256], strides = [1, 1]} : vector<3x290xf32> to vector<3x256xf32>
    %25 = vector.broadcast %1 : vector<1x256xf32> to vector<3x256xf32>
    %26 = arith.mulf %24, %25 : vector<3x256xf32>
    %27 = tpu.concatenate %8, %9, %12, %15, %16, %19, %22, %23, %26 in 0 : vector<3x256xf32>, vector<3x256xf32>, vector<3x256xf32>, vector<3x256xf32>, vector<3x256xf32>, vector<3x256xf32>, vector<3x256xf32>, vector<3x256xf32>, vector<3x256xf32> -> vector<27x256xf32>
    %c0_6 = arith.constant 0 : index
    %c0_7 = arith.constant 0 : index
    %28 = vector.load %arg4[%c0_6, %c0_7] : memref<16x27xf32, #tpu.memory_space<vmem>>, vector<16x27xf32>
    %cst_8 = arith.constant dense<0.000000e+00> : vector<16x256xf32>
    %29 = tpu.matmul %28, %27, %cst_8 {dimension_numbers = #tpu.dot_dimension_numbers<[1], [0], [0], [1], [0, 0, 1, 1], [], []>} : vector<16x27xf32>, vector<27x256xf32>, vector<16x256xf32> -> vector<16x256xf32>
    %c0_9 = arith.constant 0 : index
    %c0_10 = arith.constant 0 : index
    %30 = vector.load %arg5[%c0_9, %c0_10] : memref<16x1xf32, #tpu.memory_space<vmem>>, vector<16x1xf32>
    %31 = vector.broadcast %30 : vector<16x1xf32> to vector<16x256xf32>
    %32 = arith.addf %29, %31 : vector<16x256xf32>
    %cst_11 = arith.constant 0.000000e+00 : f32
    %33 = vector.broadcast %cst_11 : f32 to vector<16x256xf32>
    %34 = arith.maximumf %32, %33 : vector<16x256xf32>
    %cst_12 = arith.constant 0.000000e+00 : f32
    %35 = vector.broadcast %cst_12 : f32 to vector<16x17xf32>
    %36 = tpu.concatenate %35, %34, %35 in 1 : vector<16x17xf32>, vector<16x256xf32>, vector<16x17xf32> -> vector<16x290xf32>
    %37 = vector.extract_strided_slice %36 {offsets = [0, 0], sizes = [16, 256], strides = [1, 1]} : vector<16x290xf32> to vector<16x256xf32>
    %38 = vector.broadcast %0 : vector<1x256xf32> to vector<16x256xf32>
    %39 = arith.mulf %37, %38 : vector<16x256xf32>
    %40 = vector.extract_strided_slice %36 {offsets = [0, 1], sizes = [16, 256], strides = [1, 1]} : vector<16x290xf32> to vector<16x256xf32>
    %41 = vector.extract_strided_slice %36 {offsets = [0, 2], sizes = [16, 256], strides = [1, 1]} : vector<16x290xf32> to vector<16x256xf32>
    %42 = vector.broadcast %1 : vector<1x256xf32> to vector<16x256xf32>
    %43 = arith.mulf %41, %42 : vector<16x256xf32>
    %44 = vector.extract_strided_slice %36 {offsets = [0, 16], sizes = [16, 256], strides = [1, 1]} : vector<16x290xf32> to vector<16x256xf32>
    %45 = vector.broadcast %0 : vector<1x256xf32> to vector<16x256xf32>
    %46 = arith.mulf %44, %45 : vector<16x256xf32>
    %47 = vector.extract_strided_slice %36 {offsets = [0, 17], sizes = [16, 256], strides = [1, 1]} : vector<16x290xf32> to vector<16x256xf32>
    %48 = vector.extract_strided_slice %36 {offsets = [0, 18], sizes = [16, 256], strides = [1, 1]} : vector<16x290xf32> to vector<16x256xf32>
    %49 = vector.broadcast %1 : vector<1x256xf32> to vector<16x256xf32>
    %50 = arith.mulf %48, %49 : vector<16x256xf32>
    %51 = vector.extract_strided_slice %36 {offsets = [0, 32], sizes = [16, 256], strides = [1, 1]} : vector<16x290xf32> to vector<16x256xf32>
    %52 = vector.broadcast %0 : vector<1x256xf32> to vector<16x256xf32>
    %53 = arith.mulf %51, %52 : vector<16x256xf32>
    %54 = vector.extract_strided_slice %36 {offsets = [0, 33], sizes = [16, 256], strides = [1, 1]} : vector<16x290xf32> to vector<16x256xf32>
    %55 = vector.extract_strided_slice %36 {offsets = [0, 34], sizes = [16, 256], strides = [1, 1]} : vector<16x290xf32> to vector<16x256xf32>
    %56 = vector.broadcast %1 : vector<1x256xf32> to vector<16x256xf32>
    %57 = arith.mulf %55, %56 : vector<16x256xf32>
    %58 = tpu.concatenate %39, %40, %43, %46, %47, %50, %53, %54, %57 in 0 : vector<16x256xf32>, vector<16x256xf32>, vector<16x256xf32>, vector<16x256xf32>, vector<16x256xf32>, vector<16x256xf32>, vector<16x256xf32>, vector<16x256xf32>, vector<16x256xf32> -> vector<144x256xf32>
    %c0_13 = arith.constant 0 : index
    %c0_14 = arith.constant 0 : index
    %59 = vector.load %arg6[%c0_13, %c0_14] : memref<8x144xf32, #tpu.memory_space<vmem>>, vector<8x144xf32>
    %cst_15 = arith.constant dense<0.000000e+00> : vector<8x256xf32>
    %60 = tpu.matmul %59, %58, %cst_15 {dimension_numbers = #tpu.dot_dimension_numbers<[1], [0], [0], [1], [0, 0, 1, 1], [], []>} : vector<8x144xf32>, vector<144x256xf32>, vector<8x256xf32> -> vector<8x256xf32>
    %c0_16 = arith.constant 0 : index
    %c0_17 = arith.constant 0 : index
    %61 = vector.load %arg7[%c0_16, %c0_17] : memref<8x1xf32, #tpu.memory_space<vmem>>, vector<8x1xf32>
    %62 = vector.broadcast %61 : vector<8x1xf32> to vector<8x256xf32>
    %63 = arith.addf %60, %62 : vector<8x256xf32>
    %64 = vector.extract_strided_slice %63 {offsets = [0, 0], sizes = [3, 256], strides = [1, 1]} : vector<8x256xf32> to vector<3x256xf32>
    %c0_18 = arith.constant 0 : index
    %c0_19 = arith.constant 0 : index
    %c0_20 = arith.constant 0 : index
    %65 = vector.load %arg17[%c0_18, %c0_19, %c0_20] : memref<1x3x256xf32, #tpu.memory_space<vmem>>, vector<1x3x256xf32>
    %66 = vector.shape_cast %65 : vector<1x3x256xf32> to vector<3x256xf32>
    %67 = vector.shape_cast %64 : vector<3x256xf32> to vector<1x3x256xf32>
    tpu.vector_store %arg17[%c0_18, %c0_19, %c0_20], %67 {strides = array<i32>} : memref<1x3x256xf32, #tpu.memory_space<vmem>>, vector<1x3x256xf32>,
    %cst_21 = arith.constant dense<0xFF800000> : vector<256xf32>
    %68 = vector.multi_reduction <maximumf>, %64, %cst_21 [0] : vector<3x256xf32> to vector<256xf32>
    %69 = vector.shape_cast %68 : vector<256xf32> to vector<1x256xf32>
    %70 = vector.broadcast %69 : vector<1x256xf32> to vector<3x256xf32>
    %71 = arith.subf %64, %70 : vector<3x256xf32>
    %72 = math.exp %71 : vector<3x256xf32>
    %cst_22 = arith.constant dense<0.000000e+00> : vector<256xf32>
    %73 = vector.multi_reduction <add>, %72, %cst_22 [0] : vector<3x256xf32> to vector<256xf32>
    %74 = vector.shape_cast %73 : vector<256xf32> to vector<1x256xf32>
    %75 = vector.broadcast %74 : vector<1x256xf32> to vector<3x256xf32>
    %76 = arith.divf %72, %75 : vector<3x256xf32>
    %77 = tpu.concatenate %3, %76 in 0 : vector<3x256xf32>, vector<3x256xf32> -> vector<6x256xf32>
    %cst_23 = arith.constant 0.000000e+00 : f32
    %78 = vector.broadcast %cst_23 : f32 to vector<6x17xf32>
    %79 = tpu.concatenate %78, %77, %78 in 1 : vector<6x17xf32>, vector<6x256xf32>, vector<6x17xf32> -> vector<6x290xf32>
    %80 = vector.extract_strided_slice %79 {offsets = [0, 0], sizes = [6, 256], strides = [1, 1]} : vector<6x290xf32> to vector<6x256xf32>
    %81 = vector.broadcast %0 : vector<1x256xf32> to vector<6x256xf32>
    %82 = arith.mulf %80, %81 : vector<6x256xf32>
    %83 = vector.extract_strided_slice %79 {offsets = [0, 1], sizes = [6, 256], strides = [1, 1]} : vector<6x290xf32> to vector<6x256xf32>
    %84 = vector.extract_strided_slice %79 {offsets = [0, 2], sizes = [6, 256], strides = [1, 1]} : vector<6x290xf32> to vector<6x256xf32>
    %85 = vector.broadcast %1 : vector<1x256xf32> to vector<6x256xf32>
    %86 = arith.mulf %84, %85 : vector<6x256xf32>
    %87 = vector.extract_strided_slice %79 {offsets = [0, 16], sizes = [6, 256], strides = [1, 1]} : vector<6x290xf32> to vector<6x256xf32>
    %88 = vector.broadcast %0 : vector<1x256xf32> to vector<6x256xf32>
    %89 = arith.mulf %87, %88 : vector<6x256xf32>
    %90 = vector.extract_strided_slice %79 {offsets = [0, 17], sizes = [6, 256], strides = [1, 1]} : vector<6x290xf32> to vector<6x256xf32>
    %91 = vector.extract_strided_slice %79 {offsets = [0, 18], sizes = [6, 256], strides = [1, 1]} : vector<6x290xf32> to vector<6x256xf32>
    %92 = vector.broadcast %1 : vector<1x256xf32> to vector<6x256xf32>
    %93 = arith.mulf %91, %92 : vector<6x256xf32>
    %94 = vector.extract_strided_slice %79 {offsets = [0, 32], sizes = [6, 256], strides = [1, 1]} : vector<6x290xf32> to vector<6x256xf32>
    %95 = vector.broadcast %0 : vector<1x256xf32> to vector<6x256xf32>
    %96 = arith.mulf %94, %95 : vector<6x256xf32>
    %97 = vector.extract_strided_slice %79 {offsets = [0, 33], sizes = [6, 256], strides = [1, 1]} : vector<6x290xf32> to vector<6x256xf32>
    %98 = vector.extract_strided_slice %79 {offsets = [0, 34], sizes = [6, 256], strides = [1, 1]} : vector<6x290xf32> to vector<6x256xf32>
    %99 = vector.broadcast %1 : vector<1x256xf32> to vector<6x256xf32>
    %100 = arith.mulf %98, %99 : vector<6x256xf32>
    %101 = tpu.concatenate %82, %83, %86, %89, %90, %93, %96, %97, %100 in 0 : vector<6x256xf32>, vector<6x256xf32>, vector<6x256xf32>, vector<6x256xf32>, vector<6x256xf32>, vector<6x256xf32>, vector<6x256xf32>, vector<6x256xf32>, vector<6x256xf32> -> vector<54x256xf32>
    %c0_24 = arith.constant 0 : index
    %c0_25 = arith.constant 0 : index
    %102 = vector.load %arg8[%c0_24, %c0_25] : memref<16x54xf32, #tpu.memory_space<vmem>>, vector<16x54xf32>
    %cst_26 = arith.constant dense<0.000000e+00> : vector<16x256xf32>
    %103 = tpu.matmul %102, %101, %cst_26 {dimension_numbers = #tpu.dot_dimension_numbers<[1], [0], [0], [1], [0, 0, 1, 1], [], []>} : vector<16x54xf32>, vector<54x256xf32>, vector<16x256xf32> -> vector<16x256xf32>
    %c0_27 = arith.constant 0 : index
    %c0_28 = arith.constant 0 : index
    %104 = vector.load %arg9[%c0_27, %c0_28] : memref<16x1xf32, #tpu.memory_space<vmem>>, vector<16x1xf32>
    %105 = vector.broadcast %104 : vector<16x1xf32> to vector<16x256xf32>
    %106 = arith.addf %103, %105 : vector<16x256xf32>
    %cst_29 = arith.constant 0.000000e+00 : f32
    %107 = vector.broadcast %cst_29 : f32 to vector<16x256xf32>
    %108 = arith.maximumf %106, %107 : vector<16x256xf32>
    %cst_30 = arith.constant 0.000000e+00 : f32
    %109 = vector.broadcast %cst_30 : f32 to vector<16x17xf32>
    %110 = tpu.concatenate %109, %108, %109 in 1 : vector<16x17xf32>, vector<16x256xf32>, vector<16x17xf32> -> vector<16x290xf32>
    %111 = vector.extract_strided_slice %110 {offsets = [0, 0], sizes = [16, 256], strides = [1, 1]} : vector<16x290xf32> to vector<16x256xf32>
    %112 = vector.broadcast %0 : vector<1x256xf32> to vector<16x256xf32>
    %113 = arith.mulf %111, %112 : vector<16x256xf32>
    %114 = vector.extract_strided_slice %110 {offsets = [0, 1], sizes = [16, 256], strides = [1, 1]} : vector<16x290xf32> to vector<16x256xf32>
    %115 = vector.extract_strided_slice %110 {offsets = [0, 2], sizes = [16, 256], strides = [1, 1]} : vector<16x290xf32> to vector<16x256xf32>
    %116 = vector.broadcast %1 : vector<1x256xf32> to vector<16x256xf32>
    %117 = arith.mulf %115, %116 : vector<16x256xf32>
    %118 = vector.extract_strided_slice %110 {offsets = [0, 16], sizes = [16, 256], strides = [1, 1]} : vector<16x290xf32> to vector<16x256xf32>
    %119 = vector.broadcast %0 : vector<1x256xf32> to vector<16x256xf32>
    %120 = arith.mulf %118, %119 : vector<16x256xf32>
    %121 = vector.extract_strided_slice %110 {offsets = [0, 17], sizes = [16, 256], strides = [1, 1]} : vector<16x290xf32> to vector<16x256xf32>
    %122 = vector.extract_strided_slice %110 {offsets = [0, 18], sizes = [16, 256], strides = [1, 1]} : vector<16x290xf32> to vector<16x256xf32>
    %123 = vector.broadcast %1 : vector<1x256xf32> to vector<16x256xf32>
    %124 = arith.mulf %122, %123 : vector<16x256xf32>
    %125 = vector.extract_strided_slice %110 {offsets = [0, 32], sizes = [16, 256], strides = [1, 1]} : vector<16x290xf32> to vector<16x256xf32>
    %126 = vector.broadcast %0 : vector<1x256xf32> to vector<16x256xf32>
    %127 = arith.mulf %125, %126 : vector<16x256xf32>
    %128 = vector.extract_strided_slice %110 {offsets = [0, 33], sizes = [16, 256], strides = [1, 1]} : vector<16x290xf32> to vector<16x256xf32>
    %129 = vector.extract_strided_slice %110 {offsets = [0, 34], sizes = [16, 256], strides = [1, 1]} : vector<16x290xf32> to vector<16x256xf32>
    %130 = vector.broadcast %1 : vector<1x256xf32> to vector<16x256xf32>
    %131 = arith.mulf %129, %130 : vector<16x256xf32>
    %132 = tpu.concatenate %113, %114, %117, %120, %121, %124, %127, %128, %131 in 0 : vector<16x256xf32>, vector<16x256xf32>, vector<16x256xf32>, vector<16x256xf32>, vector<16x256xf32>, vector<16x256xf32>, vector<16x256xf32>, vector<16x256xf32>, vector<16x256xf32> -> vector<144x256xf32>
    %c0_31 = arith.constant 0 : index
    %c0_32 = arith.constant 0 : index
    %133 = vector.load %arg10[%c0_31, %c0_32] : memref<8x144xf32, #tpu.memory_space<vmem>>, vector<8x144xf32>
    %cst_33 = arith.constant dense<0.000000e+00> : vector<8x256xf32>
    %134 = tpu.matmul %133, %132, %cst_33 {dimension_numbers = #tpu.dot_dimension_numbers<[1], [0], [0], [1], [0, 0, 1, 1], [], []>} : vector<8x144xf32>, vector<144x256xf32>, vector<8x256xf32> -> vector<8x256xf32>
    %c0_34 = arith.constant 0 : index
    %c0_35 = arith.constant 0 : index
    %135 = vector.load %arg11[%c0_34, %c0_35] : memref<8x1xf32, #tpu.memory_space<vmem>>, vector<8x1xf32>
    %136 = vector.broadcast %135 : vector<8x1xf32> to vector<8x256xf32>
    %137 = arith.addf %134, %136 : vector<8x256xf32>
    %138 = vector.extract_strided_slice %137 {offsets = [0, 0], sizes = [1, 256], strides = [1, 1]} : vector<8x256xf32> to vector<1x256xf32>
    %139 = arith.negf %138 : vector<1x256xf32>
    %140 = math.exp %139 : vector<1x256xf32>
    %cst_36 = arith.constant 1.000000e+00 : f32
    %141 = vector.broadcast %cst_36 : f32 to vector<1x256xf32>
    %142 = arith.addf %141, %140 : vector<1x256xf32>
    %143 = arith.divf %141, %142 : vector<1x256xf32>
    %c0_37 = arith.constant 0 : index
    %c0_38 = arith.constant 0 : index
    %c0_39 = arith.constant 0 : index
    %144 = vector.load %arg18[%c0_37, %c0_38, %c0_39] : memref<1x1x256xf32, #tpu.memory_space<vmem>>, vector<1x1x256xf32>
    %145 = vector.shape_cast %144 : vector<1x1x256xf32> to vector<1x256xf32>
    %146 = vector.shape_cast %143 : vector<1x256xf32> to vector<1x1x256xf32>
    tpu.vector_store %arg18[%c0_37, %c0_38, %c0_39], %146 {strides = array<i32>} : memref<1x1x256xf32, #tpu.memory_space<vmem>>, vector<1x1x256xf32>,
    %147 = tpu.concatenate %77, %143 in 0 : vector<6x256xf32>, vector<1x256xf32> -> vector<7x256xf32>
    %cst_40 = arith.constant 0.000000e+00 : f32
    %148 = vector.broadcast %cst_40 : f32 to vector<7x17xf32>
    %149 = tpu.concatenate %148, %147, %148 in 1 : vector<7x17xf32>, vector<7x256xf32>, vector<7x17xf32> -> vector<7x290xf32>
    %150 = vector.extract_strided_slice %149 {offsets = [0, 0], sizes = [7, 256], strides = [1, 1]} : vector<7x290xf32> to vector<7x256xf32>
    %151 = vector.broadcast %0 : vector<1x256xf32> to vector<7x256xf32>
    %152 = arith.mulf %150, %151 : vector<7x256xf32>
    %153 = vector.extract_strided_slice %149 {offsets = [0, 1], sizes = [7, 256], strides = [1, 1]} : vector<7x290xf32> to vector<7x256xf32>
    %154 = vector.extract_strided_slice %149 {offsets = [0, 2], sizes = [7, 256], strides = [1, 1]} : vector<7x290xf32> to vector<7x256xf32>
    %155 = vector.broadcast %1 : vector<1x256xf32> to vector<7x256xf32>
    %156 = arith.mulf %154, %155 : vector<7x256xf32>
    %157 = vector.extract_strided_slice %149 {offsets = [0, 16], sizes = [7, 256], strides = [1, 1]} : vector<7x290xf32> to vector<7x256xf32>
    %158 = vector.broadcast %0 : vector<1x256xf32> to vector<7x256xf32>
    %159 = arith.mulf %157, %158 : vector<7x256xf32>
    %160 = vector.extract_strided_slice %149 {offsets = [0, 17], sizes = [7, 256], strides = [1, 1]} : vector<7x290xf32> to vector<7x256xf32>
    %161 = vector.extract_strided_slice %149 {offsets = [0, 18], sizes = [7, 256], strides = [1, 1]} : vector<7x290xf32> to vector<7x256xf32>
    %162 = vector.broadcast %1 : vector<1x256xf32> to vector<7x256xf32>
    %163 = arith.mulf %161, %162 : vector<7x256xf32>
    %164 = vector.extract_strided_slice %149 {offsets = [0, 32], sizes = [7, 256], strides = [1, 1]} : vector<7x290xf32> to vector<7x256xf32>
    %165 = vector.broadcast %0 : vector<1x256xf32> to vector<7x256xf32>
    %166 = arith.mulf %164, %165 : vector<7x256xf32>
    %167 = vector.extract_strided_slice %149 {offsets = [0, 33], sizes = [7, 256], strides = [1, 1]} : vector<7x290xf32> to vector<7x256xf32>
    %168 = vector.extract_strided_slice %149 {offsets = [0, 34], sizes = [7, 256], strides = [1, 1]} : vector<7x290xf32> to vector<7x256xf32>
    %169 = vector.broadcast %1 : vector<1x256xf32> to vector<7x256xf32>
    %170 = arith.mulf %168, %169 : vector<7x256xf32>
    %171 = tpu.concatenate %152, %153, %156, %159, %160, %163, %166, %167, %170 in 0 : vector<7x256xf32>, vector<7x256xf32>, vector<7x256xf32>, vector<7x256xf32>, vector<7x256xf32>, vector<7x256xf32>, vector<7x256xf32>, vector<7x256xf32>, vector<7x256xf32> -> vector<63x256xf32>
    %c0_41 = arith.constant 0 : index
    %c0_42 = arith.constant 0 : index
    %172 = vector.load %arg12[%c0_41, %c0_42] : memref<16x63xf32, #tpu.memory_space<vmem>>, vector<16x63xf32>
    %cst_43 = arith.constant dense<0.000000e+00> : vector<16x256xf32>
    %173 = tpu.matmul %172, %171, %cst_43 {dimension_numbers = #tpu.dot_dimension_numbers<[1], [0], [0], [1], [0, 0, 1, 1], [], []>} : vector<16x63xf32>, vector<63x256xf32>, vector<16x256xf32> -> vector<16x256xf32>
    %c0_44 = arith.constant 0 : index
    %c0_45 = arith.constant 0 : index
    %174 = vector.load %arg13[%c0_44, %c0_45] : memref<16x1xf32, #tpu.memory_space<vmem>>, vector<16x1xf32>
    %175 = vector.broadcast %174 : vector<16x1xf32> to vector<16x256xf32>
    %176 = arith.addf %173, %175 : vector<16x256xf32>
    %cst_46 = arith.constant 0.000000e+00 : f32
    %177 = vector.broadcast %cst_46 : f32 to vector<16x256xf32>
    %178 = arith.maximumf %176, %177 : vector<16x256xf32>
    %cst_47 = arith.constant 0.000000e+00 : f32
    %179 = vector.broadcast %cst_47 : f32 to vector<16x17xf32>
    %180 = tpu.concatenate %179, %178, %179 in 1 : vector<16x17xf32>, vector<16x256xf32>, vector<16x17xf32> -> vector<16x290xf32>
    %181 = vector.extract_strided_slice %180 {offsets = [0, 0], sizes = [16, 256], strides = [1, 1]} : vector<16x290xf32> to vector<16x256xf32>
    %182 = vector.broadcast %0 : vector<1x256xf32> to vector<16x256xf32>
    %183 = arith.mulf %181, %182 : vector<16x256xf32>
    %184 = vector.extract_strided_slice %180 {offsets = [0, 1], sizes = [16, 256], strides = [1, 1]} : vector<16x290xf32> to vector<16x256xf32>
    %185 = vector.extract_strided_slice %180 {offsets = [0, 2], sizes = [16, 256], strides = [1, 1]} : vector<16x290xf32> to vector<16x256xf32>
    %186 = vector.broadcast %1 : vector<1x256xf32> to vector<16x256xf32>
    %187 = arith.mulf %185, %186 : vector<16x256xf32>
    %188 = vector.extract_strided_slice %180 {offsets = [0, 16], sizes = [16, 256], strides = [1, 1]} : vector<16x290xf32> to vector<16x256xf32>
    %189 = vector.broadcast %0 : vector<1x256xf32> to vector<16x256xf32>
    %190 = arith.mulf %188, %189 : vector<16x256xf32>
    %191 = vector.extract_strided_slice %180 {offsets = [0, 17], sizes = [16, 256], strides = [1, 1]} : vector<16x290xf32> to vector<16x256xf32>
    %192 = vector.extract_strided_slice %180 {offsets = [0, 18], sizes = [16, 256], strides = [1, 1]} : vector<16x290xf32> to vector<16x256xf32>
    %193 = vector.broadcast %1 : vector<1x256xf32> to vector<16x256xf32>
    %194 = arith.mulf %192, %193 : vector<16x256xf32>
    %195 = vector.extract_strided_slice %180 {offsets = [0, 32], sizes = [16, 256], strides = [1, 1]} : vector<16x290xf32> to vector<16x256xf32>
    %196 = vector.broadcast %0 : vector<1x256xf32> to vector<16x256xf32>
    %197 = arith.mulf %195, %196 : vector<16x256xf32>
    %198 = vector.extract_strided_slice %180 {offsets = [0, 33], sizes = [16, 256], strides = [1, 1]} : vector<16x290xf32> to vector<16x256xf32>
    %199 = vector.extract_strided_slice %180 {offsets = [0, 34], sizes = [16, 256], strides = [1, 1]} : vector<16x290xf32> to vector<16x256xf32>
    %200 = vector.broadcast %1 : vector<1x256xf32> to vector<16x256xf32>
    %201 = arith.mulf %199, %200 : vector<16x256xf32>
    %202 = tpu.concatenate %183, %184, %187, %190, %191, %194, %197, %198, %201 in 0 : vector<16x256xf32>, vector<16x256xf32>, vector<16x256xf32>, vector<16x256xf32>, vector<16x256xf32>, vector<16x256xf32>, vector<16x256xf32>, vector<16x256xf32>, vector<16x256xf32> -> vector<144x256xf32>
    %c0_48 = arith.constant 0 : index
    %c0_49 = arith.constant 0 : index
    %203 = vector.load %arg14[%c0_48, %c0_49] : memref<8x144xf32, #tpu.memory_space<vmem>>, vector<8x144xf32>
    %cst_50 = arith.constant dense<0.000000e+00> : vector<8x256xf32>
    %204 = tpu.matmul %203, %202, %cst_50 {dimension_numbers = #tpu.dot_dimension_numbers<[1], [0], [0], [1], [0, 0, 1, 1], [], []>} : vector<8x144xf32>, vector<144x256xf32>, vector<8x256xf32> -> vector<8x256xf32>
    %c0_51 = arith.constant 0 : index
    %c0_52 = arith.constant 0 : index
    %205 = vector.load %arg15[%c0_51, %c0_52] : memref<8x1xf32, #tpu.memory_space<vmem>>, vector<8x1xf32>
    %206 = vector.broadcast %205 : vector<8x1xf32> to vector<8x256xf32>
    %207 = arith.addf %204, %206 : vector<8x256xf32>
    %208 = vector.extract_strided_slice %207 {offsets = [0, 0], sizes = [1, 256], strides = [1, 1]} : vector<8x256xf32> to vector<1x256xf32>
    %209 = arith.negf %208 : vector<1x256xf32>
    %210 = math.exp %209 : vector<1x256xf32>
    %cst_53 = arith.constant 1.000000e+00 : f32
    %211 = vector.broadcast %cst_53 : f32 to vector<1x256xf32>
    %212 = arith.addf %211, %210 : vector<1x256xf32>
    %213 = arith.divf %211, %212 : vector<1x256xf32>
    %c0_54 = arith.constant 0 : index
    %c0_55 = arith.constant 0 : index
    %c0_56 = arith.constant 0 : index
    %214 = vector.load %arg16[%c0_54, %c0_55, %c0_56] : memref<1x1x256xf32, #tpu.memory_space<vmem>>, vector<1x1x256xf32>
    %215 = vector.shape_cast %214 : vector<1x1x256xf32> to vector<1x256xf32>
    %216 = vector.shape_cast %213 : vector<1x256xf32> to vector<1x1x256xf32>
    tpu.vector_store %arg16[%c0_54, %c0_55, %c0_56], %216 {strides = array<i32>} : memref<1x1x256xf32, #tpu.memory_space<vmem>>, vector<1x1x256xf32>,
    return
  }
  func.func @transform_0(%arg0: i32) -> (i32, i32, i32) {
    %c0_i32 = arith.constant 0 : i32
    %c0_i32_0 = arith.constant 0 : i32
    %c0_i32_1 = arith.constant 0 : i32
    return %arg0, %c0_i32, %c0_i32_0 : i32, i32, i32
  }
  func.func @transform_1(%arg0: i32) -> (i32, i32) {
    %c0_i32 = arith.constant 0 : i32
    %c0_i32_0 = arith.constant 0 : i32
    %c0_i32_1 = arith.constant 0 : i32
    return %c0_i32, %c0_i32_0 : i32, i32
  }
  func.func @transform_2(%arg0: i32) -> (i32, i32) {
    %c0_i32 = arith.constant 0 : i32
    %c0_i32_0 = arith.constant 0 : i32
    %c0_i32_1 = arith.constant 0 : i32
    return %c0_i32, %c0_i32_0 : i32, i32
  }
  func.func @transform_3(%arg0: i32) -> (i32, i32) {
    %c0_i32 = arith.constant 0 : i32
    %c0_i32_0 = arith.constant 0 : i32
    %c0_i32_1 = arith.constant 0 : i32
    return %c0_i32, %c0_i32_0 : i32, i32
  }
  func.func @transform_4(%arg0: i32) -> (i32, i32) {
    %c0_i32 = arith.constant 0 : i32
    %c0_i32_0 = arith.constant 0 : i32
    %c0_i32_1 = arith.constant 0 : i32
    return %c0_i32, %c0_i32_0 : i32, i32
  }
  func.func @transform_5(%arg0: i32) -> (i32, i32) {
    %c0_i32 = arith.constant 0 : i32
    %c0_i32_0 = arith.constant 0 : i32
    %c0_i32_1 = arith.constant 0 : i32
    return %c0_i32, %c0_i32_0 : i32, i32
  }
  func.func @transform_6(%arg0: i32) -> (i32, i32) {
    %c0_i32 = arith.constant 0 : i32
    %c0_i32_0 = arith.constant 0 : i32
    %c0_i32_1 = arith.constant 0 : i32
    return %c0_i32, %c0_i32_0 : i32, i32
  }
  func.func @transform_7(%arg0: i32) -> (i32, i32) {
    %c0_i32 = arith.constant 0 : i32
    %c0_i32_0 = arith.constant 0 : i32
    %c0_i32_1 = arith.constant 0 : i32
    return %c0_i32, %c0_i32_0 : i32, i32
  }
  func.func @transform_8(%arg0: i32) -> (i32, i32) {
    %c0_i32 = arith.constant 0 : i32
    %c0_i32_0 = arith.constant 0 : i32
    %c0_i32_1 = arith.constant 0 : i32
    return %c0_i32, %c0_i32_0 : i32, i32
  }
  func.func @transform_9(%arg0: i32) -> (i32, i32) {
    %c0_i32 = arith.constant 0 : i32
    %c0_i32_0 = arith.constant 0 : i32
    %c0_i32_1 = arith.constant 0 : i32
    return %c0_i32, %c0_i32_0 : i32, i32
  }
  func.func @transform_10(%arg0: i32) -> (i32, i32) {
    %c0_i32 = arith.constant 0 : i32
    %c0_i32_0 = arith.constant 0 : i32
    %c0_i32_1 = arith.constant 0 : i32
    return %c0_i32, %c0_i32_0 : i32, i32
  }
  func.func @transform_11(%arg0: i32) -> (i32, i32) {
    %c0_i32 = arith.constant 0 : i32
    %c0_i32_0 = arith.constant 0 : i32
    %c0_i32_1 = arith.constant 0 : i32
    return %c0_i32, %c0_i32_0 : i32, i32
  }
  func.func @transform_12(%arg0: i32) -> (i32, i32) {
    %c0_i32 = arith.constant 0 : i32
    %c0_i32_0 = arith.constant 0 : i32
    %c0_i32_1 = arith.constant 0 : i32
    return %c0_i32, %c0_i32_0 : i32, i32
  }
  func.func @transform_13(%arg0: i32) -> (i32, i32) {
    %c0_i32 = arith.constant 0 : i32
    %c0_i32_0 = arith.constant 0 : i32
    %c0_i32_1 = arith.constant 0 : i32
    return %c0_i32, %c0_i32_0 : i32, i32
  }
  func.func @transform_14(%arg0: i32) -> (i32, i32) {
    %c0_i32 = arith.constant 0 : i32
    %c0_i32_0 = arith.constant 0 : i32
    %c0_i32_1 = arith.constant 0 : i32
    return %c0_i32, %c0_i32_0 : i32, i32
  }
  func.func @transform_15(%arg0: i32) -> (i32, i32, i32) {
    %c0_i32 = arith.constant 0 : i32
    %c0_i32_0 = arith.constant 0 : i32
    %c0_i32_1 = arith.constant 0 : i32
    return %arg0, %c0_i32, %c0_i32_0 : i32, i32, i32
  }
  func.func @transform_16(%arg0: i32) -> (i32, i32, i32) {
    %c0_i32 = arith.constant 0 : i32
    %c0_i32_0 = arith.constant 0 : i32
    %c0_i32_1 = arith.constant 0 : i32
    return %arg0, %c0_i32, %c0_i32_0 : i32, i32, i32
  }
  func.func @transform_17(%arg0: i32) -> (i32, i32, i32) {
    %c0_i32 = arith.constant 0 : i32
    %c0_i32_0 = arith.constant 0 : i32
    %c0_i32_1 = arith.constant 0 : i32
    return %arg0, %c0_i32, %c0_i32_0 : i32, i32, i32
  }
}

</mosaic_0001>

<llo_original>
// kernel: matting_net_forward.1
$region0: #{matting_net_forward.1}
  #allocation0 [shape = 'u32[]', space=smem, size = 0x4, offset = 0x4, fixed_abs, tag = 'smem constant byte address 0x4 - core index']
  #allocation1 [shape = 'u32[144,128]{1,0:T(1,128)}', space=vmem, size = 0x12000, scoped, tag = 'internal scratch']
  %s0 = inlined_call_operand.vmem [shape: f32[2,3,256], index: 0, kind: input, shape index: {}]
  %s1 = inlined_call_operand.vmem [shape: f32[1,256], index: 1, kind: input, shape index: {}]
  %s2 = inlined_call_operand.vmem [shape: f32[1,256], index: 2, kind: input, shape index: {}]
  %s3 = inlined_call_operand.vmem [shape: f32[16,27], index: 3, kind: input, shape index: {}]
  %s4 = inlined_call_operand.vmem [shape: f32[16,1], index: 4, kind: input, shape index: {}]
  %s5 = inlined_call_operand.vmem [shape: f32[8,144], index: 5, kind: input, shape index: {}]
  %s6 = inlined_call_operand.vmem [shape: f32[8,1], index: 6, kind: input, shape index: {}]
  %s7 = inlined_call_operand.vmem [shape: f32[16,54], index: 7, kind: input, shape index: {}]
  %s8 = inlined_call_operand.vmem [shape: f32[16,1], index: 8, kind: input, shape index: {}]
  %s9 = inlined_call_operand.vmem [shape: f32[8,144], index: 9, kind: input, shape index: {}]
  %s10 = inlined_call_operand.vmem [shape: f32[8,1], index: 10, kind: input, shape index: {}]
  %s11 = inlined_call_operand.vmem [shape: f32[16,63], index: 11, kind: input, shape index: {}]
  %s12 = inlined_call_operand.vmem [shape: f32[16,1], index: 12, kind: input, shape index: {}]
  %s13 = inlined_call_operand.vmem [shape: f32[8,144], index: 13, kind: input, shape index: {}]
  %s14 = inlined_call_operand.vmem [shape: f32[8,1], index: 14, kind: input, shape index: {}]
  %s15 = inlined_call_operand.vmem [shape: f32[2,1,256], index: 15, kind: output, shape index: {0}]
  %s16 = inlined_call_operand.vmem [shape: f32[2,3,256], index: 16, kind: output, shape index: {1}]
  %s17 = inlined_call_operand.vmem [shape: f32[2,1,256], index: 17, kind: output, shape index: {2}]
  %18 = xla_tuple %s15, %s16, %s17
  %s19 = sld [smem:[#allocation0]]
  $region109: #{matting_net_forward.1} parent=0
    _
  %s21 = ssub.s32 1, %s19
  %s22 = scalar_select 0, %s21, %s19
  loop: start=0, step=1, limit=4
  $region2: #{matting_net_forward.1} parent=0 // loop_pre_header
    _
  $region3: #{matting_net_forward.1} parent=0 // loop_header
    %s24 = sphi 0, %s28
    %p25 = scmp.ge.s32.totalorder %s24, 4
    %s34 = sphi 0, %s36
    %s37 = sphi 0, %s34
    %s38 = sphi 0, %s37
    %s54 = sphi 0, %s38
    %s58 = sphi 0, %s58
    %s60 = sphi 0, %s58
    %s61 = sphi 0, %s60
    %s75 = sphi 0, %s61
    %s79 = sphi 0, %s79
    %s81 = sphi 0, %s79
    %s82 = sphi 0, %s81
    %s96 = sphi 0, %s82
    %s100 = sphi 0, %s100
    %s102 = sphi 0, %s100
    %s103 = sphi 0, %s102
    %s117 = sphi 0, %s103
    %s121 = sphi 0, %s121
    %s123 = sphi 0, %s121
    %s124 = sphi 0, %s123
    %s138 = sphi 0, %s124
    %s142 = sphi 0, %s142
    %s144 = sphi 0, %s142
    %s145 = sphi 0, %s144
    %s159 = sphi 0, %s145
    %s163 = sphi 0, %s163
    %s165 = sphi 0, %s163
    %s166 = sphi 0, %s165
    %s180 = sphi 0, %s166
    %s184 = sphi 0, %s184
    %s186 = sphi 0, %s184
    %s187 = sphi 0, %s186
    %s201 = sphi 0, %s187
    %s205 = sphi 0, %s205
    %s207 = sphi 0, %s205
    %s208 = sphi 0, %s207
    %s222 = sphi 0, %s208
    %s226 = sphi 0, %s226
    %s228 = sphi 0, %s226
    %s229 = sphi 0, %s228
    %s243 = sphi 0, %s229
    %s247 = sphi 0, %s247
    %s249 = sphi 0, %s247
    %s250 = sphi 0, %s249
    %s264 = sphi 0, %s250
    %s268 = sphi 0, %s268
    %s270 = sphi 0, %s268
    %s271 = sphi 0, %s270
    %s285 = sphi 0, %s271
    %s289 = sphi 0, %s289
    %s291 = sphi 0, %s289
    %s292 = sphi 0, %s291
    %s306 = sphi 0, %s292
    %s310 = sphi 0, %s310
    %s312 = sphi 0, %s310
    %s313 = sphi 0, %s312
    %s327 = sphi 0, %s313
    %s331 = sphi 0, %s331
    %s333 = sphi 0, %s331
    %s334 = sphi 0, %s333
    %s348 = sphi 0, %s334
    %s354 = sphi 0, %s356
    %s357 = sphi 0, %s354
    %s358 = sphi 0, %s357
    %s374 = sphi 0, %s358
    %s380 = sphi 0, %s382
    %s383 = sphi 0, %s380
    %s384 = sphi 0, %s383
    %s400 = sphi 0, %s384
    %s406 = sphi 0, %s408
    %s409 = sphi 0, %s406
    %s410 = sphi 0, %s409
    %s426 = sphi 0, %s410
  $region4: #{matting_net_forward.1} parent=0 // loop_header_branch
    %27 = sbr.rel (%p25) target = $region8
  $region5: #{matting_net_forward.1} parent=0 // loop_body
    %s29 = ssub.s32 %s24, 1
    %s30 = ssub.s32 %s24, 2
    %s31 = sadd.s32 %s24, 1
    %s32 = ssub.s32 %s24, %s31
    %p33 = scmp.eq.s32.totalorder %s32, 0
    %s35 = sadd.s32 %s34, 1
    %s36 = scalar_select %p33, %s34, %s35
    %p39 = pneg %p33
    %p40 = scmp.eq.s32.totalorder %s24, 1
    %p41 = por %p39, %p40
    %p42 = scmp.ne.s32.totalorder %s34, %s37
    %p43 = scmp.eq.s32.totalorder %s24, 0
    %p44 = por %p42, %p43
    %p45 = scmp.ne.s32.totalorder %s34, %s37
    %p46 = scmp.eq.s32.totalorder %s29, 1
    %p47 = por %p45, %p46
    %p48 = scmp.ne.s32.totalorder %s37, %s38
    %p49 = scmp.eq.s32.totalorder %s29, 0
    %p50 = por %p48, %p49
    %p51 = scmp.ne.s32.totalorder %s37, %s38
    %p52 = scmp.eq.s32.totalorder %s30, 1
    %p53 = por %p51, %p52
    %p55 = scmp.ne.s32.totalorder %s38, %s54
    %p56 = scmp.eq.s32.totalorder %s30, 0
    %p57 = por %p55, %p56
    %s59 = sadd.s32 %s58, 1
    %p62 = scmp.eq.s32.totalorder %s24, 1
    %p63 = scmp.ne.s32.totalorder %s58, %s60
    %p64 = scmp.eq.s32.totalorder %s24, 0
    %p65 = por %p63, %p64
    %p66 = scmp.ne.s32.totalorder %s58, %s60
    %p67 = scmp.eq.s32.totalorder %s29, 1
    %p68 = por %p66, %p67
    %p69 = scmp.ne.s32.totalorder %s60, %s61
    %p70 = scmp.eq.s32.totalorder %s29, 0
    %p71 = por %p69, %p70
    %p72 = scmp.ne.s32.totalorder %s60, %s61
    %p73 = scmp.eq.s32.totalorder %s30, 1
    %p74 = por %p72, %p73
    %p76 = scmp.ne.s32.totalorder %s61, %s75
    %p77 = scmp.eq.s32.totalorder %s30, 0
    %p78 = por %p76, %p77
    %s80 = sadd.s32 %s79, 1
    %p83 = scmp.eq.s32.totalorder %s24, 1
    %p84 = scmp.ne.s32.totalorder %s79, %s81
    %p85 = scmp.eq.s32.totalorder %s24, 0
    %p86 = por %p84, %p85
    %p87 = scmp.ne.s32.totalorder %s79, %s81
    %p88 = scmp.eq.s32.totalorder %s29, 1
    %p89 = por %p87, %p88
    %p90 = scmp.ne.s32.totalorder %s81, %s82
    %p91 = scmp.eq.s32.totalorder %s29, 0
    %p92 = por %p90, %p91
    %p93 = scmp.ne.s32.totalorder %s81, %s82
    %p94 = scmp.eq.s32.totalorder %s30, 1
    %p95 = por %p93, %p94
    %p97 = scmp.ne.s32.totalorder %s82, %s96
    %p98 = scmp.eq.s32.totalorder %s30, 0
    %p99 = por %p97, %p98
    %s101 = sadd.s32 %s100, 1
    %p104 = scmp.eq.s32.totalorder %s24, 1
    %p105 = scmp.ne.s32.totalorder %s100, %s102
    %p106 = scmp.eq.s32.totalorder %s24, 0
    %p107 = por %p105, %p106
    %p108 = scmp.ne.s32.totalorder %s100, %s102
    %p109 = scmp.eq.s32.totalorder %s29, 1
    %p110 = por %p108, %p109
    %p111 = scmp.ne.s32.totalorder %s102, %s103
    %p112 = scmp.eq.s32.totalorder %s29, 0
    %p113 = por %p111, %p112
    %p114 = scmp.ne.s32.totalorder %s102, %s103
    %p115 = scmp.eq.s32.totalorder %s30, 1
    %p116 = por %p114, %p115
    %p118 = scmp.ne.s32.totalorder %s103, %s117
    %p119 = scmp.eq.s32.totalorder %s30, 0
    %p120 = por %p118, %p119
    %s122 = sadd.s32 %s121, 1
    %p125 = scmp.eq.s32.totalorder %s24, 1
    %p126 = scmp.ne.s32.totalorder %s121, %s123
    %p127 = scmp.eq.s32.totalorder %s24, 0
    %p128 = por %p126, %p127
    %p129 = scmp.ne.s32.totalorder %s121, %s123
    %p130 = scmp.eq.s32.totalorder %s29, 1
    %p131 = por %p129, %p130
    %p132 = scmp.ne.s32.totalorder %s123, %s124
    %p133 = scmp.eq.s32.totalorder %s29, 0
    %p134 = por %p132, %p133
    %p135 = scmp.ne.s32.totalorder %s123, %s124
    %p136 = scmp.eq.s32.totalorder %s30, 1
    %p137 = por %p135, %p136
    %p139 = scmp.ne.s32.totalorder %s124, %s138
    %p140 = scmp.eq.s32.totalorder %s30, 0
    %p141 = por %p139, %p140
    %s143 = sadd.s32 %s142, 1
    %p146 = scmp.eq.s32.totalorder %s24, 1
    %p147 = scmp.ne.s32.totalorder %s142, %s144
    %p148 = scmp.eq.s32.totalorder %s24, 0
    %p149 = por %p147, %p148
    %p150 = scmp.ne.s32.totalorder %s142, %s144
    %p151 = scmp.eq.s32.totalorder %s29, 1
    %p152 = por %p150, %p151
    %p153 = scmp.ne.s32.totalorder %s144, %s145
    %p154 = scmp.eq.s32.totalorder %s29, 0
    %p155 = por %p153, %p154
    %p156 = scmp.ne.s32.totalorder %s144, %s145
    %p157 = scmp.eq.s32.totalorder %s30, 1
    %p158 = por %p156, %p157
    %p160 = scmp.ne.s32.totalorder %s145, %s159
    %p161 = scmp.eq.s32.totalorder %s30, 0
    %p162 = por %p160, %p161
    %s164 = sadd.s32 %s163, 1
    %p167 = scmp.eq.s32.totalorder %s24, 1
    %p168 = scmp.ne.s32.totalorder %s163, %s165
    %p169 = scmp.eq.s32.totalorder %s24, 0
    %p170 = por %p168, %p169
    %p171 = scmp.ne.s32.totalorder %s163, %s165
    %p172 = scmp.eq.s32.totalorder %s29, 1
    %p173 = por %p171, %p172
    %p174 = scmp.ne.s32.totalorder %s165, %s166
    %p175 = scmp.eq.s32.totalorder %s29, 0
    %p176 = por %p174, %p175
    %p177 = scmp.ne.s32.totalorder %s165, %s166
    %p178 = scmp.eq.s32.totalorder %s30, 1
    %p179 = por %p177, %p178
    %p181 = scmp.ne.s32.totalorder %s166, %s180
    %p182 = scmp.eq.s32.totalorder %s30, 0
    %p183 = por %p181, %p182
    %s185 = sadd.s32 %s184, 1
    %p188 = scmp.eq.s32.totalorder %s24, 1
    %p189 = scmp.ne.s32.totalorder %s184, %s186
    %p190 = scmp.eq.s32.totalorder %s24, 0
    %p191 = por %p189, %p190
    %p192 = scmp.ne.s32.totalorder %s184, %s186
    %p193 = scmp.eq.s32.totalorder %s29, 1
    %p194 = por %p192, %p193
    %p195 = scmp.ne.s32.totalorder %s186, %s187
    %p196 = scmp.eq.s32.totalorder %s29, 0
    %p197 = por %p195, %p196
    %p198 = scmp.ne.s32.totalorder %s186, %s187
    %p199 = scmp.eq.s32.totalorder %s30, 1
    %p200 = por %p198, %p199
    %p202 = scmp.ne.s32.totalorder %s187, %s201
    %p203 = scmp.eq.s32.totalorder %s30, 0
    %p204 = por %p202, %p203
    %s206 = sadd.s32 %s205, 1
    %p209 = scmp.eq.s32.totalorder %s24, 1
    %p210 = scmp.ne.s32.totalorder %s205, %s207
    %p211 = scmp.eq.s32.totalorder %s24, 0
    %p212 = por %p210, %p211
    %p213 = scmp.ne.s32.totalorder %s205, %s207
    %p214 = scmp.eq.s32.totalorder %s29, 1
    %p215 = por %p213, %p214
    %p216 = scmp.ne.s32.totalorder %s207, %s208
    %p217 = scmp.eq.s32.totalorder %s29, 0
    %p218 = por %p216, %p217
    %p219 = scmp.ne.s32.totalorder %s207, %s208
    %p220 = scmp.eq.s32.totalorder %s30, 1
    %p221 = por %p219, %p220
    %p223 = scmp.ne.s32.totalorder %s208, %s222
    %p224 = scmp.eq.s32.totalorder %s30, 0
    %p225 = por %p223, %p224
    %s227 = sadd.s32 %s226, 1
    %p230 = scmp.eq.s32.totalorder %s24, 1
    %p231 = scmp.ne.s32.totalorder %s226, %s228
    %p232 = scmp.eq.s32.totalorder %s24, 0
    %p233 = por %p231, %p232
    %p234 = scmp.ne.s32.totalorder %s226, %s228
    %p235 = scmp.eq.s32.totalorder %s29, 1
    %p236 = por %p234, %p235
    %p237 = scmp.ne.s32.totalorder %s228, %s229
    %p238 = scmp.eq.s32.totalorder %s29, 0
    %p239 = por %p237, %p238
    %p240 = scmp.ne.s32.totalorder %s228, %s229
    %p241 = scmp.eq.s32.totalorder %s30, 1
    %p242 = por %p240, %p241
    %p244 = scmp.ne.s32.totalorder %s229, %s243
    %p245 = scmp.eq.s32.totalorder %s30, 0
    %p246 = por %p244, %p245
    %s248 = sadd.s32 %s247, 1
    %p251 = scmp.eq.s32.totalorder %s24, 1
    %p252 = scmp.ne.s32.totalorder %s247, %s249
    %p253 = scmp.eq.s32.totalorder %s24, 0
    %p254 = por %p252, %p253
    %p255 = scmp.ne.s32.totalorder %s247, %s249
    %p256 = scmp.eq.s32.totalorder %s29, 1
    %p257 = por %p255, %p256
    %p258 = scmp.ne.s32.totalorder %s249, %s250
    %p259 = scmp.eq.s32.totalorder %s29, 0
    %p260 = por %p258, %p259
    %p261 = scmp.ne.s32.totalorder %s249, %s250
    %p262 = scmp.eq.s32.totalorder %s30, 1
    %p263 = por %p261, %p262
    %p265 = scmp.ne.s32.totalorder %s250, %s264
    %p266 = scmp.eq.s32.totalorder %s30, 0
    %p267 = por %p265, %p266
    %s269 = sadd.s32 %s268, 1
    %p272 = scmp.eq.s32.totalorder %s24, 1
    %p273 = scmp.ne.s32.totalorder %s268, %s270
    %p274 = scmp.eq.s32.totalorder %s24, 0
    %p275 = por %p273, %p274
    %p276 = scmp.ne.s32.totalorder %s268, %s270
    %p277 = scmp.eq.s32.totalorder %s29, 1
    %p278 = por %p276, %p277
    %p279 = scmp.ne.s32.totalorder %s270, %s271
    %p280 = scmp.eq.s32.totalorder %s29, 0
    %p281 = por %p279, %p280
    %p282 = scmp.ne.s32.totalorder %s270, %s271
    %p283 = scmp.eq.s32.totalorder %s30, 1
    %p284 = por %p282, %p283
    %p286 = scmp.ne.s32.totalorder %s271, %s285
    %p287 = scmp.eq.s32.totalorder %s30, 0
    %p288 = por %p286, %p287
    %s290 = sadd.s32 %s289, 1
    %p293 = scmp.eq.s32.totalorder %s24, 1
    %p294 = scmp.ne.s32.totalorder %s289, %s291
    %p295 = scmp.eq.s32.totalorder %s24, 0
    %p296 = por %p294, %p295
    %p297 = scmp.ne.s32.totalorder %s289, %s291
    %p298 = scmp.eq.s32.totalorder %s29, 1
    %p299 = por %p297, %p298
    %p300 = scmp.ne.s32.totalorder %s291, %s292
    %p301 = scmp.eq.s32.totalorder %s29, 0
    %p302 = por %p300, %p301
    %p303 = scmp.ne.s32.totalorder %s291, %s292
    %p304 = scmp.eq.s32.totalorder %s30, 1
    %p305 = por %p303, %p304
    %p307 = scmp.ne.s32.totalorder %s292, %s306
    %p308 = scmp.eq.s32.totalorder %s30, 0
    %p309 = por %p307, %p308
    %s311 = sadd.s32 %s310, 1
    %p314 = scmp.eq.s32.totalorder %s24, 1
    %p315 = scmp.ne.s32.totalorder %s310, %s312
    %p316 = scmp.eq.s32.totalorder %s24, 0
    %p317 = por %p315, %p316
    %p318 = scmp.ne.s32.totalorder %s310, %s312
    %p319 = scmp.eq.s32.totalorder %s29, 1
    %p320 = por %p318, %p319
    %p321 = scmp.ne.s32.totalorder %s312, %s313
    %p322 = scmp.eq.s32.totalorder %s29, 0
    %p323 = por %p321, %p322
    %p324 = scmp.ne.s32.totalorder %s312, %s313
    %p325 = scmp.eq.s32.totalorder %s30, 1
    %p326 = por %p324, %p325
    %p328 = scmp.ne.s32.totalorder %s313, %s327
    %p329 = scmp.eq.s32.totalorder %s30, 0
    %p330 = por %p328, %p329
    %s332 = sadd.s32 %s331, 1
    %p335 = scmp.eq.s32.totalorder %s24, 1
    %p336 = scmp.ne.s32.totalorder %s331, %s333
    %p337 = scmp.eq.s32.totalorder %s24, 0
    %p338 = por %p336, %p337
    %p339 = scmp.ne.s32.totalorder %s331, %s333
    %p340 = scmp.eq.s32.totalorder %s29, 1
    %p341 = por %p339, %p340
    %p342 = scmp.ne.s32.totalorder %s333, %s334
    %p343 = scmp.eq.s32.totalorder %s29, 0
    %p344 = por %p342, %p343
    %p345 = scmp.ne.s32.totalorder %s333, %s334
    %p346 = scmp.eq.s32.totalorder %s30, 1
    %p347 = por %p345, %p346
    %p349 = scmp.ne.s32.totalorder %s334, %s348
    %p350 = scmp.eq.s32.totalorder %s30, 0
    %p351 = por %p349, %p350
    %s352 = ssub.s32 %s24, %s31
    %p353 = scmp.eq.s32.totalorder %s352, 0
    %s355 = sadd.s32 %s354, 1
    %s356 = scalar_select %p353, %s354, %s355
    %p359 = pneg %p353
    %p360 = scmp.eq.s32.totalorder %s24, 1
    %p361 = por %p359, %p360
    %p362 = scmp.ne.s32.totalorder %s354, %s357
    %p363 = scmp.eq.s32.totalorder %s24, 0
    %p364 = por %p362, %p363
    %p365 = scmp.ne.s32.totalorder %s354, %s357
    %p366 = scmp.eq.s32.totalorder %s29, 1
    %p367 = por %p365, %p366
    %p368 = scmp.ne.s32.totalorder %s357, %s358
    %p369 = scmp.eq.s32.totalorder %s29, 0
    %p370 = por %p368, %p369
    %p371 = scmp.ne.s32.totalorder %s357, %s358
    %p372 = scmp.eq.s32.totalorder %s30, 1
    %p373 = por %p371, %p372
    %p375 = scmp.ne.s32.totalorder %s358, %s374
    %p376 = scmp.eq.s32.totalorder %s30, 0
    %p377 = por %p375, %p376
    %s378 = ssub.s32 %s24, %s31
    %p379 = scmp.eq.s32.totalorder %s378, 0
    %s381 = sadd.s32 %s380, 1
    %s382 = scalar_select %p379, %s380, %s381
    %p385 = pneg %p379
    %p386 = scmp.eq.s32.totalorder %s24, 1
    %p387 = por %p385, %p386
    %p388 = scmp.ne.s32.totalorder %s380, %s383
    %p389 = scmp.eq.s32.totalorder %s24, 0
    %p390 = por %p388, %p389
    %p391 = scmp.ne.s32.totalorder %s380, %s383
    %p392 = scmp.eq.s32.totalorder %s29, 1
    %p393 = por %p391, %p392
    %p394 = scmp.ne.s32.totalorder %s383, %s384
    %p395 = scmp.eq.s32.totalorder %s29, 0
    %p396 = por %p394, %p395
    %p397 = scmp.ne.s32.totalorder %s383, %s384
    %p398 = scmp.eq.s32.totalorder %s30, 1
    %p399 = por %p397, %p398
    %p401 = scmp.ne.s32.totalorder %s384, %s400
    %p402 = scmp.eq.s32.totalorder %s30, 0
    %p403 = por %p401, %p402
    %s404 = ssub.s32 %s24, %s31
    %p405 = scmp.eq.s32.totalorder %s404, 0
    %s407 = sadd.s32 %s406, 1
    %s408 = scalar_select %p405, %s406, %s407
    %p411 = pneg %p405
    %p412 = scmp.eq.s32.totalorder %s24, 1
    %p413 = por %p411, %p412
    %p414 = scmp.ne.s32.totalorder %s406, %s409
    %p415 = scmp.eq.s32.totalorder %s24, 0
    %p416 = por %p414, %p415
    %p417 = scmp.ne.s32.totalorder %s406, %s409
    %p418 = scmp.eq.s32.totalorder %s29, 1
    %p419 = por %p417, %p418
    %p420 = scmp.ne.s32.totalorder %s409, %s410
    %p421 = scmp.eq.s32.totalorder %s29, 0
    %p422 = por %p420, %p421
    %p423 = scmp.ne.s32.totalorder %s409, %s410
    %p424 = scmp.eq.s32.totalorder %s30, 1
    %p425 = por %p423, %p424
    %p427 = scmp.ne.s32.totalorder %s410, %s426
    %p428 = scmp.eq.s32.totalorder %s30, 0
    %p429 = por %p427, %p428
    %p430 = scmp.le.s32.totalorder 1, %s24
    %p431 = scmp.lt.s32.totalorder %s24, 3
    %p432 = pnand %p430, %p431
    %p433 = pneg %p432
    // Predicated region
    $region9: #{matting_net_forward.1} parent=5 // pred_check
      _
    $region10: #{matting_net_forward.1} parent=5 // pred_check_branch
      %435 = sbr.rel (%p432) target = $region12
    $region11: #{matting_net_forward.1} parent=5 // pred_region
      %s436 = ssub.s32 %s24, 1
      // Predicated region
      $region13: #{matting_net_forward.1} parent=11 // pred_check
        %p437 = pneg %p71
      $region14: #{matting_net_forward.1} parent=11 // pred_check_branch
        %439 = sbr.rel (%p437) target = $region16
      $region15: #{matting_net_forward.1} parent=11 // pred_region
        _
      $region16: #{matting_net_forward.1} parent=11 // pred_fallthru
        _
      // Predicated region
      $region17: #{matting_net_forward.1} parent=11 // pred_check
        %p440 = pneg %p92
      $region18: #{matting_net_forward.1} parent=11 // pred_check_branch
        %442 = sbr.rel (%p440) target = $region20
      $region19: #{matting_net_forward.1} parent=11 // pred_region
        _
      $region20: #{matting_net_forward.1} parent=11 // pred_fallthru
        _
      // Predicated region
      $region21: #{matting_net_forward.1} parent=11 // pred_check
        %p443 = pneg %p113
      $region22: #{matting_net_forward.1} parent=11 // pred_check_branch
        %445 = sbr.rel (%p443) target = $region24
      $region23: #{matting_net_forward.1} parent=11 // pred_region
        _
      $region24: #{matting_net_forward.1} parent=11 // pred_fallthru
        _
      // Predicated region
      $region25: #{matting_net_forward.1} parent=11 // pred_check
        %p446 = pneg %p134
      $region26: #{matting_net_forward.1} parent=11 // pred_check_branch
        %448 = sbr.rel (%p446) target = $region28
      $region27: #{matting_net_forward.1} parent=11 // pred_region
        _
      $region28: #{matting_net_forward.1} parent=11 // pred_fallthru
        _
      // Predicated region
      $region29: #{matting_net_forward.1} parent=11 // pred_check
        %p449 = pneg %p155
      $region30: #{matting_net_forward.1} parent=11 // pred_check_branch
        %451 = sbr.rel (%p449) target = $region32
      $region31: #{matting_net_forward.1} parent=11 // pred_region
        _
      $region32: #{matting_net_forward.1} parent=11 // pred_fallthru
        _
      // Predicated region
      $region33: #{matting_net_forward.1} parent=11 // pred_check
        %p452 = pneg %p176
      $region34: #{matting_net_forward.1} parent=11 // pred_check_branch
        %454 = sbr.rel (%p452) target = $region36
      $region35: #{matting_net_forward.1} parent=11 // pred_region
        _
      $region36: #{matting_net_forward.1} parent=11 // pred_fallthru
        _
      // Predicated region
      $region37: #{matting_net_forward.1} parent=11 // pred_check
        %p455 = pneg %p197
      $region38: #{matting_net_forward.1} parent=11 // pred_check_branch
        %457 = sbr.rel (%p455) target = $region40
      $region39: #{matting_net_forward.1} parent=11 // pred_region
        _
      $region40: #{matting_net_forward.1} parent=11 // pred_fallthru
        _
      // Predicated region
      $region41: #{matting_net_forward.1} parent=11 // pred_check
        %p458 = pneg %p218
      $region42: #{matting_net_forward.1} parent=11 // pred_check_branch
        %460 = sbr.rel (%p458) target = $region44
      $region43: #{matting_net_forward.1} parent=11 // pred_region
        _
      $region44: #{matting_net_forward.1} parent=11 // pred_fallthru
        _
      // Predicated region
      $region45: #{matting_net_forward.1} parent=11 // pred_check
        %p461 = pneg %p239
      $region46: #{matting_net_forward.1} parent=11 // pred_check_branch
        %463 = sbr.rel (%p461) target = $region48
      $region47: #{matting_net_forward.1} parent=11 // pred_region
        _
      $region48: #{matting_net_forward.1} parent=11 // pred_fallthru
        _
      // Predicated region
      $region49: #{matting_net_forward.1} parent=11 // pred_check
        %p464 = pneg %p260
      $region50: #{matting_net_forward.1} parent=11 // pred_check_branch
        %466 = sbr.rel (%p464) target = $region52
      $region51: #{matting_net_forward.1} parent=11 // pred_region
        _
      $region52: #{matting_net_forward.1} parent=11 // pred_fallthru
        _
      // Predicated region
      $region53: #{matting_net_forward.1} parent=11 // pred_check
        %p467 = pneg %p281
      $region54: #{matting_net_forward.1} parent=11 // pred_check_branch
        %469 = sbr.rel (%p467) target = $region56
      $region55: #{matting_net_forward.1} parent=11 // pred_region
        _
      $region56: #{matting_net_forward.1} parent=11 // pred_fallthru
        _
      // Predicated region
      $region57: #{matting_net_forward.1} parent=11 // pred_check
        %p470 = pneg %p302
      $region58: #{matting_net_forward.1} parent=11 // pred_check_branch
        %472 = sbr.rel (%p470) target = $region60
      $region59: #{matting_net_forward.1} parent=11 // pred_region
        _
      $region60: #{matting_net_forward.1} parent=11 // pred_fallthru
        _
      // Predicated region
      $region61: #{matting_net_forward.1} parent=11 // pred_check
        %p473 = pneg %p323
      $region62: #{matting_net_forward.1} parent=11 // pred_check_branch
        %475 = sbr.rel (%p473) target = $region64
      $region63: #{matting_net_forward.1} parent=11 // pred_region
        _
      $region64: #{matting_net_forward.1} parent=11 // pred_fallthru
        _
      // Predicated region
      $region65: #{matting_net_forward.1} parent=11 // pred_check
        %p476 = pneg %p344
      $region66: #{matting_net_forward.1} parent=11 // pred_check_branch
        %478 = sbr.rel (%p476) target = $region68
      $region67: #{matting_net_forward.1} parent=11 // pred_region
        _
      $region68: #{matting_net_forward.1} parent=11 // pred_fallthru
        _
    $region12: #{matting_net_forward.1} parent=5 // pred_fallthru
      _
    %p479 = scmp.lt.s32.totalorder %s24, 2
    // Predicated region
    $region69: #{matting_net_forward.1} parent=5 // pred_check
      %p480 = pneg %p479
    $region70: #{matting_net_forward.1} parent=5 // pred_check_branch
      %482 = sbr.rel (%p480) target = $region72
    $region71: #{matting_net_forward.1} parent=5 // pred_region
      // Predicated region
      $region73: #{matting_net_forward.1} parent=71 // pred_check
        %p483 = pneg %p44
      $region74: #{matting_net_forward.1} parent=71 // pred_check_branch
        %485 = sbr.rel (%p483) target = $region76
      $region75: #{matting_net_forward.1} parent=71 // pred_region
        %p486 = scmp.lt.s32.totalorder %s24, 1
        %s487 = scalar_select %p486, %s24, 1
        %s488 = smul.addr %s487, 2
        %s489 = smul.addr %s488, 4
        %s490 = scalar_lea.vmem %s0, %s489
      $region76: #{matting_net_forward.1} parent=71 // pred_fallthru
        _
    $region72: #{matting_net_forward.1} parent=5 // pred_fallthru
      _
    %p491 = scmp.le.s32.totalorder 1, %s24
    %p492 = scmp.lt.s32.totalorder %s24, 3
    %p493 = pnand %p491, %p492
    %p494 = pneg %p493
    // Predicated region
    $region77: #{matting_net_forward.1} parent=5 // pred_check
      _
    $region78: #{matting_net_forward.1} parent=5 // pred_check_branch
      %496 = sbr.rel (%p493) target = $region80
    $region79: #{matting_net_forward.1} parent=5 // pred_region
      %s497 = ssub.s32 %s24, 1
      %p498 = scmp.lt.s32.totalorder %s29, 1
      %s499 = scalar_select %p498, %s29, 1
      %s500 = smul.addr %s499, 2
      %s501 = smul.addr %s500, 4
      %s502 = scalar_lea.vmem %s0, %s501
      %p503 = pneg %p50
      %p504 = pneg %p47
      %p505 = pneg %p71
      %p506 = pneg %p68
      %p507 = pneg %p92
      %p508 = pneg %p89
      %p509 = pneg %p113
      %p510 = pneg %p110
      %p511 = pneg %p134
      %p512 = pneg %p131
      %p513 = pneg %p155
      %p514 = pneg %p152
      %p515 = pneg %p176
      %p516 = pneg %p173
      %p517 = pneg %p197
      %p518 = pneg %p194
      %p519 = pneg %p218
      %p520 = pneg %p215
      %p521 = pneg %p239
      %p522 = pneg %p236
      %p523 = pneg %p260
      %p524 = pneg %p257
      %p525 = pneg %p281
      %p526 = pneg %p278
      %p527 = pneg %p302
      %p528 = pneg %p299
      %p529 = pneg %p323
      %p530 = pneg %p320
      %p531 = pneg %p344
      %p532 = pneg %p341
      %p533 = pneg %p370
      %p534 = pneg %p367
      %p535 = scmp.lt.s32.totalorder %s29, 1
      %s536 = scalar_select %p535, %s29, 1
      %s537 = smul.addr %s536, 2
      %s538 = scalar_lea.vmem %s15, %s537
      %p539 = pneg %p396
      %p540 = pneg %p393
      %p541 = scmp.lt.s32.totalorder %s29, 1
      %s542 = scalar_select %p541, %s29, 1
      %s543 = smul.addr %s542, 2
      %s544 = smul.addr %s543, 4
      %s545 = scalar_lea.vmem %s16, %s544
      %p546 = pneg %p422
      %p547 = pneg %p419
      %p548 = scmp.lt.s32.totalorder %s29, 1
      %s549 = scalar_select %p548, %s29, 1
      %s550 = smul.addr %s549, 2
      %s551 = scalar_lea.vmem %s17, %s550
      %p552 = scmp.lt.s32.totalorder %s29, 1
      %s553 = scalar_select %p552, %s29, 1
      %s554 = smul.addr %s553, 2
      %s555 = smul.addr %s554, 4
      %s556 = scalar_lea.vmem %s0, %s555
      %p557 = scmp.lt.s32.totalorder %s29, 1
      %s558 = scalar_select %p557, %s29, 1
      %s559 = smul.addr %s558, 2
      %s560 = scalar_lea.vmem %s15, %s559
      %p561 = scmp.lt.s32.totalorder %s29, 1
      %s562 = scalar_select %p561, %s29, 1
      %s563 = smul.addr %s562, 2
      %s564 = smul.addr %s563, 4
      %s565 = scalar_lea.vmem %s16, %s564
      %p566 = scmp.lt.s32.totalorder %s29, 1
      %s567 = scalar_select %p566, %s29, 1
      %s568 = smul.addr %s567, 2
      %s569 = scalar_lea.vmem %s17, %s568
      %v570 = vld [vmem:[%s1] sm:$0x3]
      %v571 = vld [vmem:[%s2] sm:$0x3]
      %v572 = vld [vmem:[%s556] sm:$0x77]
      %v574 = vcombine.high %v572, %v572
      %575 = vrot.lane.b32.xlu0 %v572, 17
      %v576 = vpop.permute.xlu0 %575
      %577 = vrot.lane.b32.xlu0 %v574, 17
      %v578 = vpop.permute.xlu0 %577
      %vm579 = vcmask 138240
      %v580 = vsel %vm579, %v576, %v578
      %v584 = vsel %vm579, 0.0, %v576
      %v585 = vsel %vm579, %v578, 0.0
      %v587 = vlaneseq
      %v588 = vshrl.u32 %v587, 7
      %v589 = vsub.s32 0, %v588
      %v590 = vrot.slane %v570, %v589
      %v591 = vlaneseq
      %v592 = vshrl.u32 %v591, 7
      %v593 = vsub.s32 1, %v592
      %v594 = vrot.slane %v570, %v593
      %v597 = vmul.f32 %v584, %v590
      %v598 = vmul.f32 %v580, %v594
      %v600 = vlaneseq
      %v601 = vshrl.u32 %v600, 7
      %v602 = vsub.s32 0, %v601
      %v603 = vrot.slane %v571, %v602
      %v604 = vlaneseq
      %v605 = vshrl.u32 %v604, 7
      %v606 = vsub.s32 1, %v605
      %v607 = vrot.slane %v571, %v606
      %608 = vrot.lane.b32.xlu0 %v603, 2
      %v609 = vpop.permute.xlu0 %608
      %610 = vrot.lane.b32.xlu0 %v607, 2
      %v611 = vpop.permute.xlu0 %610
      %vm612 = vcmask 15360
      %v613 = vsel %vm612, %v609, %v611
      %v617 = vmul.f32 %v584, %v609
      %v618 = vmul.f32 %v580, %v613
      %v619 = vmul.f32 %v585, %v611
      %620 = vrot.lane.b32.xlu0 %v590, 16
      %v621 = vpop.permute.xlu0 %620
      %622 = vrot.lane.b32.xlu0 %v594, 16
      %v623 = vpop.permute.xlu0 %622
      %vm624 = vcmask 130048
      %v625 = vsel %vm624, %v621, %v623
      %v629 = vmul.f32 %v584, %v621
      %v630 = vmul.f32 %v580, %v625
      %v631 = vmul.f32 %v585, %v623
      %632 = vrot.lane.b32.xlu0 %v603, 18
      %v633 = vpop.permute.xlu0 %632
      %634 = vrot.lane.b32.xlu0 %v607, 18
      %v635 = vpop.permute.xlu0 %634
      %vm636 = vcmask 146432
      %v637 = vsel %vm636, %v633, %v635
      %v641 = vmul.f32 %v584, %v633
      %v642 = vmul.f32 %v580, %v637
      %v643 = vmul.f32 %v585, %v635
      %644 = vrot.lane.b32.xlu0 %v590, 32
      %v645 = vpop.permute.xlu0 %644
      %646 = vrot.lane.b32.xlu0 %v594, 32
      %v647 = vpop.permute.xlu0 %646
      %vm648 = vcmask 261120
      %v649 = vsel %vm648, %v645, %v647
      %v653 = vmul.f32 %v584, %v645
      %v654 = vmul.f32 %v580, %v649
      %v655 = vmul.f32 %v585, %v647
      %656 = vrot.lane.b32.xlu0 %v603, 34
      %v657 = vpop.permute.xlu0 %656
      %658 = vrot.lane.b32.xlu0 %v607, 34
      %v659 = vpop.permute.xlu0 %658
      %vm660 = vcmask 277504
      %v661 = vsel %vm660, %v657, %v659
      %v665 = vmul.f32 %v584, %v657
      %v666 = vmul.f32 %v580, %v661
      %v667 = vmul.f32 %v585, %v659
      %v670 = vrot.slane %v584, 5
      %v671 = vrot.slane %v580, 5
      %v672 = vrot.slane %v585, 5
      %673 = vrot.lane.b32.xlu0 %v670, 127
      %v674 = vpop.permute.xlu0 %673
      %675 = vrot.lane.b32.xlu0 %v671, 127
      %v676 = vpop.permute.xlu0 %675
      %677 = vrot.lane.b32.xlu0 %v672, 127
      %v678 = vpop.permute.xlu0 %677
      %vm679 = vcmask 1039360
      %v680 = vsel %vm679, %v674, %v676
      %v681 = vsel %vm679, %v676, %v678
      %v687 = vrot.slane %v617, 2
      %v688 = vrot.slane %v618, 2
      %v689 = vrot.slane %v619, 2
      %690 = vrot.lane.b32.xlu0 %v687, 126
      %v691 = vpop.permute.xlu0 %690
      %692 = vrot.lane.b32.xlu0 %v688, 126
      %v693 = vpop.permute.xlu0 %692
      %694 = vrot.lane.b32.xlu0 %v689, 126
      %v695 = vpop.permute.xlu0 %694
      %vm696 = vcmask 1031168
      %v697 = vsel %vm696, %v691, %v693
      %v698 = vsel %vm696, %v693, %v695
      %v704 = vrot.slane %v629, 7
      %v705 = vrot.slane %v630, 7
      %v706 = vrot.slane %v631, 7
      %707 = vrot.lane.b32.xlu0 %v704, 112
      %v708 = vpop.permute.xlu0 %707
      %709 = vrot.lane.b32.xlu0 %v705, 112
      %v710 = vpop.permute.xlu0 %709
      %711 = vrot.lane.b32.xlu0 %v706, 112
      %v712 = vpop.permute.xlu0 %711
      %vm713 = vcmask 916480
      %v714 = vsel %vm713, %v708, %v710
      %v715 = vsel %vm713, %v710, %v712
      %v718 = vrot.slane %v584, 4
      %v719 = vrot.slane %v580, 4
      %v720 = vrot.slane %v585, 4
      %721 = vrot.lane.b32.xlu0 %v718, 111
      %v722 = vpop.permute.xlu0 %721
      %723 = vrot.lane.b32.xlu0 %v719, 111
      %v724 = vpop.permute.xlu0 %723
      %725 = vrot.lane.b32.xlu0 %v720, 111
      %v726 = vpop.permute.xlu0 %725
      %vm727 = vcmask 908288
      %v728 = vsel %vm727, %v722, %v724
      %v729 = vsel %vm727, %v724, %v726
      %v735 = vrot.slane %v641, 1
      %v736 = vrot.slane %v642, 1
      %v737 = vrot.slane %v643, 1
      %738 = vrot.lane.b32.xlu0 %v735, 110
      %v739 = vpop.permute.xlu0 %738
      %740 = vrot.lane.b32.xlu0 %v736, 110
      %v741 = vpop.permute.xlu0 %740
      %742 = vrot.lane.b32.xlu0 %v737, 110
      %v743 = vpop.permute.xlu0 %742
      %vm744 = vcmask 900096
      %v745 = vsel %vm744, %v739, %v741
      %v746 = vsel %vm744, %v741, %v743
      %v752 = vrot.slane %v653, 6
      %v753 = vrot.slane %v654, 6
      %v754 = vrot.slane %v655, 6
      %755 = vrot.lane.b32.xlu0 %v752, 96
      %v756 = vpop.permute.xlu0 %755
      %757 = vrot.lane.b32.xlu0 %v753, 96
      %v758 = vpop.permute.xlu0 %757
      %759 = vrot.lane.b32.xlu0 %v754, 96
      %v760 = vpop.permute.xlu0 %759
      %vm761 = vcmask 785408
      %v762 = vsel %vm761, %v756, %v758
      %v763 = vsel %vm761, %v758, %v760
      %v766 = vrot.slane %v584, 3
      %v767 = vrot.slane %v580, 3
      %v768 = vrot.slane %v585, 3
      %769 = vrot.lane.b32.xlu0 %v766, 95
      %v770 = vpop.permute.xlu0 %769
      %771 = vrot.lane.b32.xlu0 %v767, 95
      %v772 = vpop.permute.xlu0 %771
      %773 = vrot.lane.b32.xlu0 %v768, 95
      %v774 = vpop.permute.xlu0 %773
      %vm775 = vcmask 777216
      %v776 = vsel %vm775, %v770, %v772
      %v777 = vsel %vm775, %v772, %v774
      %783 = vrot.lane.b32.xlu0 %v665, 94
      %v784 = vpop.permute.xlu0 %783
      %785 = vrot.lane.b32.xlu0 %v666, 94
      %v786 = vpop.permute.xlu0 %785
      %787 = vrot.lane.b32.xlu0 %v667, 94
      %v788 = vpop.permute.xlu0 %787
      %vm789 = vcmask 769024
      %v790 = vsel %vm789, %v784, %v786
      %v791 = vsel %vm789, %v786, %v788
      %vm792 = vcmask 1042432
      %v793 = vsel %vm792, %v597, %v680
      %v794 = vsel %vm792, %v598, %v681
      %vm795 = vcmask 1045504
      %v796 = vsel %vm795, %v793, %v697
      %v797 = vsel %vm795, %v794, %v698
      %vm798 = vcmask 1040384
      %v799 = vsel %vm798, %v697, %v714
      %v800 = vsel %vm798, %v698, %v715
      %vm801 = vcmask 1043456
      %v802 = vsel %vm801, %v799, %v728
      %v803 = vsel %vm801, %v800, %v729
      %vm804 = vcmask 1046528
      %v805 = vsel %vm804, %v802, %v745
      %v806 = vsel %vm804, %v803, %v746
      %vm807 = vcmask 1041408
      %v808 = vsel %vm807, %v745, %v762
      %v809 = vsel %vm807, %v746, %v763
      %vm810 = vcmask 1044480
      %v811 = vsel %vm810, %v808, %v776
      %v812 = vsel %vm810, %v809, %v777
      %v813 = vld [vmem:[%s3] sm:$0xff]
      %v814 = vld [vmem:[%s3 + $0x8] sm:$0xff]
      %v815 = vld [vmem:[%s4] sm:$0xff]
      %v816 = vld [vmem:[%s4 + $0x8] sm:$0xff]
      %818 = vset.pattern.permute.xlu0 0
      %819 = vperm.xlu0 %818, %v815
      %v820 = vpop.permute.xlu0 %819
      %823 = vset.pattern.permute.xlu0 0
      %824 = vperm.xlu0 %823, %v816
      %v825 = vpop.permute.xlu0 %824
      %vm827 = vcmask 220160
      %v829 = vsel %vm827, %v813, 0
      %v832 = vsel %vm827, %v814, 0
      %v834 = vsel %vm792, %v790, 0
      %v836 = vsel %vm792, %v791, 0
      %838 = vmatprep.subr.mxu0 %v797
      %839 = vmatpush1.msra.mxu0 %v796
      %840 = vmatprep.subr.mxu0 %v806
      %841 = vmatpush1.msra.mxu0 %v805
      %842 = vmatprep.subr.mxu0 %v812
      %843 = vmatpush1.msra.mxu0 %v811
      %844 = vmatprep.subr.mxu0 %v836
      %845 = vmatpush1.msra.mxu0 %v834
      %846 = vmatprep.subr.mxu0 0.0
      %847 = vmatpush1.msra.mxu0 0.0
      %848 = vmatprep.subr.mxu0 0.0
      %849 = vmatpush1.msra.mxu0 0.0
      %850 = vmatprep.subr.mxu0 0.0
      %851 = vmatpush1.msra.mxu0 0.0
      %852 = vmatprep.subr.mxu0 0.0
      %853 = vmatpush1.msra.mxu0 0.0
      %854 = vmatprep.subr.mxu0 0.0
      %855 = vmatpush1.msra.mxu0 0.0
      %856 = vmatprep.subr.mxu0 0.0
      %857 = vmatpush1.msra.mxu0 0.0
      %858 = vmatprep.subr.mxu0 0.0
      %859 = vmatpush1.msra.mxu0 0.0
      %860 = vmatprep.subr.mxu0 0.0
      %861 = vmatpush1.msra.mxu0 0.0
      %862 = vmatprep.subr.mxu0 0.0
      %863 = vmatpush1.msra.mxu0 0.0
      %864 = vmatprep.subr.mxu0 0.0
      %865 = vmatpush1.msra.mxu0 0.0
      %866 = vmatprep.subr.mxu0 0.0
      %867 = vmatpush1.msra.mxu0 0.0
      %868 = vmatprep.subr.mxu0 0.0
      %869 = vmatpush1.msra.mxu0 0.0
      %870 = vmatprep.subr.mxu0 0.0
      %871 = vmatpush1.msra.mxu0 0.0
      %872 = vmatprep.subr.mxu0 0.0
      %873 = vmatpush1.msra.mxu0 0.0
      %874 = vmatprep.subr.mxu0 0.0
      %875 = vmatpush1.msra.mxu0 0.0
      %876 = vmatprep.subr.mxu0 0.0
      %877 = vmatpush1.msra.mxu0 0.0
      %878 = vmatprep.subr.mxu0 0.0
      %879 = vmatpush1.msra.mxu0 0.0
      %880 = vmatprep.subr.mxu0 0.0
      %881 = vmatpush1.msra.mxu0 0.0
      %882 = vmatprep.subr.mxu0 0.0
      %883 = vmatpush1.msra.mxu0 0.0
      %884 = vmatprep.subr.mxu0 0.0
      %885 = vmatpush1.msra.mxu0 0.0
      %886 = vmatprep.subr.mxu0 0.0
      %887 = vmatpush1.msra.mxu0 0.0
      %888 = vmatprep.subr.mxu0 0.0
      %889 = vmatpush1.msra.mxu0 0.0
      %890 = vmatprep.subr.mxu0 0.0
      %891 = vmatpush1.msra.mxu0 0.0
      %892 = vmatprep.subr.mxu0 0.0
      %893 = vmatpush1.msra.mxu0 0.0
      %894 = vmatprep.subr.mxu0 0.0
      %895 = vmatpush1.msra.mxu0 0.0
      %896 = vmatprep.subr.mxu0 0.0
      %897 = vmatpush1.msra.mxu0 0.0
      %898 = vmatprep.subr.mxu0 0.0
      %899 = vmatpush1.msra.mxu0 0.0
      %900 = vmatprep.subr.mxu0 0.0
      %901 = vmatpush1.msra.mxu0 0.0
      %902 = vmatprep.mubr.f32.mxu0 0.0
      %903 = vmatmul.mubr.f32.gmra.mrb[0].mxu0 %v829
      %v904 = vpop.f32.mrb[0].mxu0
      %v905 = vadd.f32 %v820, %v904
      %v906 = vpop.f32.mrb[0].mxu0
      %v907 = vadd.f32 %v820, %v906
      %908 = vmatprep.mubr.f32.mxu0 0.0
      %909 = vmatmul.mubr.f32.gmra.mrb[0].mxu0 %v832
      %v910 = vpop.f32.mrb[0].mxu0
      %v911 = vadd.f32 %v825, %v910
      %v912 = vpop.f32.mrb[0].mxu0
      %v913 = vadd.f32 %v825, %v912
      %914 = vdwg.mxu0
      %v915 = vmax.f32 %v905, 0.0
      %v916 = vmax.f32 %v907, 0.0
      %v917 = vmax.f32 %v911, 0.0
      %v918 = vmax.f32 %v913, 0.0
      %923 = vrot.lane.b32.xlu0 %v915, 17
      %v924 = vpop.permute.xlu0 %923
      %925 = vrot.lane.b32.xlu0 %v916, 17
      %v926 = vpop.permute.xlu0 %925
      %927 = vrot.lane.b32.xlu0 %v917, 17
      %v928 = vpop.permute.xlu0 %927
      %929 = vrot.lane.b32.xlu0 %v918, 17
      %v930 = vpop.permute.xlu0 %929
      %v931 = vsel %vm579, %v924, %v926
      %v932 = vsel %vm579, %v928, %v930
      %v939 = vsel %vm579, 0.0, %v924
      %v940 = vsel %vm579, 0.0, %v928
      %v941 = vsel %vm579, %v926, 0.0
      %v942 = vsel %vm579, %v930, 0.0
      %v943 = vmul.f32 %v939, %v590
      %v944 = vmul.f32 %v931, %v594
      %v945 = vmul.f32 %v940, %v590
      %v946 = vmul.f32 %v932, %v594
      %v947 = vmul.f32 %v939, %v609
      %v948 = vmul.f32 %v931, %v613
      %v949 = vmul.f32 %v941, %v611
      %v950 = vmul.f32 %v940, %v609
      %v951 = vmul.f32 %v932, %v613
      %v952 = vmul.f32 %v942, %v611
      %v953 = vmul.f32 %v939, %v621
      %v954 = vmul.f32 %v931, %v625
      %v955 = vmul.f32 %v941, %v623
      %v956 = vmul.f32 %v940, %v621
      %v957 = vmul.f32 %v932, %v625
      %v958 = vmul.f32 %v942, %v623
      %v959 = vmul.f32 %v939, %v633
      %v960 = vmul.f32 %v931, %v637
      %v961 = vmul.f32 %v941, %v635
      %v962 = vmul.f32 %v940, %v633
      %v963 = vmul.f32 %v932, %v637
      %v964 = vmul.f32 %v942, %v635
      %v965 = vmul.f32 %v939, %v645
      %v966 = vmul.f32 %v931, %v649
      %v967 = vmul.f32 %v941, %v647
      %v968 = vmul.f32 %v940, %v645
      %v969 = vmul.f32 %v932, %v649
      %v970 = vmul.f32 %v942, %v647
      %v971 = vmul.f32 %v939, %v657
      %v972 = vmul.f32 %v931, %v661
      %v973 = vmul.f32 %v941, %v659
      %v974 = vmul.f32 %v940, %v657
      %v975 = vmul.f32 %v932, %v661
      %v976 = vmul.f32 %v942, %v659
      %981 = vrot.lane.b32.xlu0 %v939, 127
      %v982 = vpop.permute.xlu0 %981
      %983 = vrot.lane.b32.xlu0 %v931, 127
      %v984 = vpop.permute.xlu0 %983
      %985 = vrot.lane.b32.xlu0 %v941, 127
      %v986 = vpop.permute.xlu0 %985
      %987 = vrot.lane.b32.xlu0 %v940, 127
      %v988 = vpop.permute.xlu0 %987
      %989 = vrot.lane.b32.xlu0 %v932, 127
      %v990 = vpop.permute.xlu0 %989
      %991 = vrot.lane.b32.xlu0 %v942, 127
      %v992 = vpop.permute.xlu0 %991
      %v993 = vsel %vm679, %v982, %v984
      %v994 = vsel %vm679, %v984, %v986
      %v995 = vsel %vm679, %v988, %v990
      %v996 = vsel %vm679, %v990, %v992
      %1007 = vrot.lane.b32.xlu0 %v947, 126
      %v1008 = vpop.permute.xlu0 %1007
      %1009 = vrot.lane.b32.xlu0 %v948, 126
      %v1010 = vpop.permute.xlu0 %1009
      %1011 = vrot.lane.b32.xlu0 %v949, 126
      %v1012 = vpop.permute.xlu0 %1011
      %1013 = vrot.lane.b32.xlu0 %v950, 126
      %v1014 = vpop.permute.xlu0 %1013
      %1015 = vrot.lane.b32.xlu0 %v951, 126
      %v1016 = vpop.permute.xlu0 %1015
      %1017 = vrot.lane.b32.xlu0 %v952, 126
      %v1018 = vpop.permute.xlu0 %1017
      %v1019 = vsel %vm696, %v1008, %v1010
      %v1020 = vsel %vm696, %v1010, %v1012
      %v1021 = vsel %vm696, %v1014, %v1016
      %v1022 = vsel %vm696, %v1016, %v1018
      %1033 = vrot.lane.b32.xlu0 %v953, 112
      %v1034 = vpop.permute.xlu0 %1033
      %1035 = vrot.lane.b32.xlu0 %v954, 112
      %v1036 = vpop.permute.xlu0 %1035
      %1037 = vrot.lane.b32.xlu0 %v955, 112
      %v1038 = vpop.permute.xlu0 %1037
      %1039 = vrot.lane.b32.xlu0 %v956, 112
      %v1040 = vpop.permute.xlu0 %1039
      %1041 = vrot.lane.b32.xlu0 %v957, 112
      %v1042 = vpop.permute.xlu0 %1041
      %1043 = vrot.lane.b32.xlu0 %v958, 112
      %v1044 = vpop.permute.xlu0 %1043
      %v1045 = vsel %vm713, %v1034, %v1036
      %v1046 = vsel %vm713, %v1036, %v1038
      %v1047 = vsel %vm713, %v1040, %v1042
      %v1048 = vsel %vm713, %v1042, %v1044
      %1053 = vrot.lane.b32.xlu0 %v939, 111
      %v1054 = vpop.permute.xlu0 %1053
      %1055 = vrot.lane.b32.xlu0 %v931, 111
      %v1056 = vpop.permute.xlu0 %1055
      %1057 = vrot.lane.b32.xlu0 %v941, 111
      %v1058 = vpop.permute.xlu0 %1057
      %1059 = vrot.lane.b32.xlu0 %v940, 111
      %v1060 = vpop.permute.xlu0 %1059
      %1061 = vrot.lane.b32.xlu0 %v932, 111
      %v1062 = vpop.permute.xlu0 %1061
      %1063 = vrot.lane.b32.xlu0 %v942, 111
      %v1064 = vpop.permute.xlu0 %1063
      %v1065 = vsel %vm727, %v1054, %v1056
      %v1066 = vsel %vm727, %v1056, %v1058
      %v1067 = vsel %vm727, %v1060, %v1062
      %v1068 = vsel %vm727, %v1062, %v1064
      %1079 = vrot.lane.b32.xlu0 %v959, 110
      %v1080 = vpop.permute.xlu0 %1079
      %1081 = vrot.lane.b32.xlu0 %v960, 110
      %v1082 = vpop.permute.xlu0 %1081
      %1083 = vrot.lane.b32.xlu0 %v961, 110
      %v1084 = vpop.permute.xlu0 %1083
      %1085 = vrot.lane.b32.xlu0 %v962, 110
      %v1086 = vpop.permute.xlu0 %1085
      %1087 = vrot.lane.b32.xlu0 %v963, 110
      %v1088 = vpop.permute.xlu0 %1087
      %1089 = vrot.lane.b32.xlu0 %v964, 110
      %v1090 = vpop.permute.xlu0 %1089
      %v1091 = vsel %vm744, %v1080, %v1082
      %v1092 = vsel %vm744, %v1082, %v1084
      %v1093 = vsel %vm744, %v1086, %v1088
      %v1094 = vsel %vm744, %v1088, %v1090
      %1105 = vrot.lane.b32.xlu0 %v965, 96
      %v1106 = vpop.permute.xlu0 %1105
      %1107 = vrot.lane.b32.xlu0 %v966, 96
      %v1108 = vpop.permute.xlu0 %1107
      %1109 = vrot.lane.b32.xlu0 %v967, 96
      %v1110 = vpop.permute.xlu0 %1109
      %1111 = vrot.lane.b32.xlu0 %v968, 96
      %v1112 = vpop.permute.xlu0 %1111
      %1113 = vrot.lane.b32.xlu0 %v969, 96
      %v1114 = vpop.permute.xlu0 %1113
      %1115 = vrot.lane.b32.xlu0 %v970, 96
      %v1116 = vpop.permute.xlu0 %1115
      %v1117 = vsel %vm761, %v1106, %v1108
      %v1118 = vsel %vm761, %v1108, %v1110
      %v1119 = vsel %vm761, %v1112, %v1114
      %v1120 = vsel %vm761, %v1114, %v1116
      %1125 = vrot.lane.b32.xlu0 %v939, 95
      %v1126 = vpop.permute.xlu0 %1125
      %1127 = vrot.lane.b32.xlu0 %v931, 95
      %v1128 = vpop.permute.xlu0 %1127
      %1129 = vrot.lane.b32.xlu0 %v941, 95
      %v1130 = vpop.permute.xlu0 %1129
      %1131 = vrot.lane.b32.xlu0 %v940, 95
      %v1132 = vpop.permute.xlu0 %1131
      %1133 = vrot.lane.b32.xlu0 %v932, 95
      %v1134 = vpop.permute.xlu0 %1133
      %1135 = vrot.lane.b32.xlu0 %v942, 95
      %v1136 = vpop.permute.xlu0 %1135
      %v1137 = vsel %vm775, %v1126, %v1128
      %v1138 = vsel %vm775, %v1128, %v1130
      %v1139 = vsel %vm775, %v1132, %v1134
      %v1140 = vsel %vm775, %v1134, %v1136
      %1151 = vrot.lane.b32.xlu0 %v971, 94
      %v1152 = vpop.permute.xlu0 %1151
      %1153 = vrot.lane.b32.xlu0 %v972, 94
      %v1154 = vpop.permute.xlu0 %1153
      %1155 = vrot.lane.b32.xlu0 %v973, 94
      %v1156 = vpop.permute.xlu0 %1155
      %1157 = vrot.lane.b32.xlu0 %v974, 94
      %v1158 = vpop.permute.xlu0 %1157
      %1159 = vrot.lane.b32.xlu0 %v975, 94
      %v1160 = vpop.permute.xlu0 %1159
      %1161 = vrot.lane.b32.xlu0 %v976, 94
      %v1162 = vpop.permute.xlu0 %1161
      %v1163 = vsel %vm789, %v1152, %v1154
      %v1164 = vsel %vm789, %v1154, %v1156
      %v1165 = vsel %vm789, %v1158, %v1160
      %v1166 = vsel %vm789, %v1160, %v1162
      %v1171 = vld [vmem:[%s5] sm:$0xff]
      %v1172 = vld [vmem:[%s5 + $0x8] sm:$0xff]
      %v1173 = vld [vmem:[%s6] sm:$0xff]
      %1175 = vset.pattern.permute.xlu0 0
      %1176 = vperm.xlu0 %1175, %v1173
      %v1177 = vpop.permute.xlu0 %1176
      %v1180 = vsel %vm624, %v1172, 0
      %1182 = vmatprep.subr.mxu0 %v944
      %1183 = vmatpush1.msra.mxu0 %v943
      %1184 = vmatprep.subr.mxu0 %v946
      %1185 = vmatpush1.msra.mxu0 %v945
      %1186 = vmatprep.subr.mxu0 %v994
      %1187 = vmatpush1.msra.mxu0 %v993
      %1188 = vmatprep.subr.mxu0 %v996
      %1189 = vmatpush1.msra.mxu0 %v995
      %1190 = vmatprep.subr.mxu0 %v1020
      %1191 = vmatpush1.msra.mxu0 %v1019
      %1192 = vmatprep.subr.mxu0 %v1022
      %1193 = vmatpush1.msra.mxu0 %v1021
      %1194 = vmatprep.subr.mxu0 %v1046
      %1195 = vmatpush1.msra.mxu0 %v1045
      %1196 = vmatprep.subr.mxu0 %v1048
      %1197 = vmatpush1.msra.mxu0 %v1047
      %1198 = vmatprep.subr.mxu0 %v1066
      %1199 = vmatpush1.msra.mxu0 %v1065
      %1200 = vmatprep.subr.mxu0 %v1068
      %1201 = vmatpush1.msra.mxu0 %v1067
      %1202 = vmatprep.subr.mxu0 %v1092
      %1203 = vmatpush1.msra.mxu0 %v1091
      %1204 = vmatprep.subr.mxu0 %v1094
      %1205 = vmatpush1.msra.mxu0 %v1093
      %1206 = vmatprep.subr.mxu0 %v1118
      %1207 = vmatpush1.msra.mxu0 %v1117
      %1208 = vmatprep.subr.mxu0 %v1120
      %1209 = vmatpush1.msra.mxu0 %v1119
      %1210 = vmatprep.subr.mxu0 %v1138
      %1211 = vmatpush1.msra.mxu0 %v1137
      %1212 = vmatprep.subr.mxu0 %v1140
      %1213 = vmatpush1.msra.mxu0 %v1139
      %1214 = vmatprep.subr.mxu0 %v1164
      %1215 = vmatpush1.msra.mxu0 %v1163
      %1216 = vmatprep.subr.mxu0 %v1166
      %1217 = vmatpush1.msra.mxu0 %v1165
      %1218 = vmatprep.subr.mxu0 0.0
      %1219 = vmatpush1.msra.mxu0 0.0
      %1220 = vmatprep.subr.mxu0 0.0
      %1221 = vmatpush1.msra.mxu0 0.0
      %1222 = vmatprep.subr.mxu0 0.0
      %1223 = vmatpush1.msra.mxu0 0.0
      %1224 = vmatprep.subr.mxu0 0.0
      %1225 = vmatpush1.msra.mxu0 0.0
      %1226 = vmatprep.subr.mxu0 0.0
      %1227 = vmatpush1.msra.mxu0 0.0
      %1228 = vmatprep.subr.mxu0 0.0
      %1229 = vmatpush1.msra.mxu0 0.0
      %1230 = vmatprep.subr.mxu0 0.0
      %1231 = vmatpush1.msra.mxu0 0.0
      %1232 = vmatprep.subr.mxu0 0.0
      %1233 = vmatpush1.msra.mxu0 0.0
      %1234 = vmatprep.subr.mxu0 0.0
      %1235 = vmatpush1.msra.mxu0 0.0
      %1236 = vmatprep.subr.mxu0 0.0
      %1237 = vmatpush1.msra.mxu0 0.0
      %1238 = vmatprep.subr.mxu0 0.0
      %1239 = vmatpush1.msra.mxu0 0.0
      %1240 = vmatprep.subr.mxu0 0.0
      %1241 = vmatpush1.msra.mxu0 0.0
      %1242 = vmatprep.subr.mxu0 0.0
      %1243 = vmatpush1.msra.mxu0 0.0
      %1244 = vmatprep.subr.mxu0 0.0
      %1245 = vmatpush1.msra.mxu0 0.0
      %1246 = vmatprep.mubr.f32.mxu0 %v1180
      %1247 = vmatmul.mubr.f32.gmra.mrb[0].mxu0 %v1171
      %v1248 = vpop.f32.mrb[0].mxu0
      %v1249 = vadd.f32 %v1177, %v1248
      %v1250 = vpop.f32.mrb[0].mxu0
      %v1251 = vadd.f32 %v1177, %v1250
      %1252 = vdwg.mxu0
      %v1255 = vcombine.low %v1249, %v1251
      %1257 = vst [vmem:[%s565] sm:$0x77] %v1255
      %v1258 = vsel %vm792, %v1249, -inf
      %v1259 = vrot.slane %v1258, 4
      %v1260 = vmax.f32 %v1258, %v1259
      %v1261 = vrot.slane %v1260, 2
      %v1262 = vmax.f32 %v1260, %v1261
      %v1263 = vrot.slane %v1262, 1
      %v1264 = vmax.f32 %v1262, %v1263
      %v1265 = vsel %vm792, %v1251, -inf
      %v1266 = vrot.slane %v1265, 4
      %v1267 = vmax.f32 %v1265, %v1266
      %v1268 = vrot.slane %v1267, 2
      %v1269 = vmax.f32 %v1267, %v1268
      %v1270 = vrot.slane %v1269, 1
      %v1271 = vmax.f32 %v1269, %v1270
      %v1272 = vsub.f32 %v1249, %v1264
      %v1273 = vsub.f32 %v1251, %v1271
      %v1274 = vmul.f32 %v1272, 1.442695
      %v1275 = vpow.pop %v1274
      %v1276 = vmul.f32 %v1273, 1.442695
      %v1277 = vpow.pop %v1276
      %v1278 = vsel %vm792, %v1275, 0.0
      %v1279 = vrot.slane %v1278, 4
      %v1280 = vadd.f32 %v1278, %v1279
      %v1281 = vrot.slane %v1280, 2
      %v1282 = vadd.f32 %v1280, %v1281
      %v1283 = vrot.slane %v1282, 1
      %v1284 = vadd.f32 %v1282, %v1283
      %v1285 = vsel %vm792, %v1277, 0.0
      %v1286 = vrot.slane %v1285, 4
      %v1287 = vadd.f32 %v1285, %v1286
      %v1288 = vrot.slane %v1287, 2
      %v1289 = vadd.f32 %v1287, %v1288
      %v1290 = vrot.slane %v1289, 1
      %v1291 = vadd.f32 %v1289, %v1290
      %v1292 = vrcp.pop %v1284
      %v1293 = vmul.f32 %v1275, %v1292
      %v1294 = vrcp.pop %v1291
      %v1295 = vmul.f32 %v1277, %v1294
      %v1299 = vrot.slane %v1293, 5
      %v1300 = vrot.slane %v1295, 5
      %v1303 = vsel %vm792, %v572, %v1299
      %v1304 = vsel %vm792, %v574, %v1300
      %1307 = vrot.lane.b32.xlu0 %v1303, 17
      %v1308 = vpop.permute.xlu0 %1307
      %1309 = vrot.lane.b32.xlu0 %v1304, 17
      %v1310 = vpop.permute.xlu0 %1309
      %v1311 = vsel %vm579, %v1308, %v1310
      %v1315 = vsel %vm579, 0.0, %v1308
      %v1316 = vsel %vm579, %v1310, 0.0
      %v1317 = vmul.f32 %v1315, %v590
      %v1318 = vmul.f32 %v1311, %v594
      %v1319 = vmul.f32 %v1315, %v609
      %v1320 = vmul.f32 %v1311, %v613
      %v1321 = vmul.f32 %v1316, %v611
      %v1322 = vmul.f32 %v1315, %v621
      %v1323 = vmul.f32 %v1311, %v625
      %v1324 = vmul.f32 %v1316, %v623
      %v1325 = vmul.f32 %v1315, %v633
      %v1326 = vmul.f32 %v1311, %v637
      %v1327 = vmul.f32 %v1316, %v635
      %v1328 = vmul.f32 %v1315, %v645
      %v1329 = vmul.f32 %v1311, %v649
      %v1330 = vmul.f32 %v1316, %v647
      %v1331 = vmul.f32 %v1315, %v657
      %v1332 = vmul.f32 %v1311, %v661
      %v1333 = vmul.f32 %v1316, %v659
      %v1336 = vrot.slane %v1315, 2
      %v1337 = vrot.slane %v1311, 2
      %v1338 = vrot.slane %v1316, 2
      %1339 = vrot.lane.b32.xlu0 %v1336, 127
      %v1340 = vpop.permute.xlu0 %1339
      %1341 = vrot.lane.b32.xlu0 %v1337, 127
      %v1342 = vpop.permute.xlu0 %1341
      %1343 = vrot.lane.b32.xlu0 %v1338, 127
      %v1344 = vpop.permute.xlu0 %1343
      %v1345 = vsel %vm679, %v1340, %v1342
      %v1346 = vsel %vm679, %v1342, %v1344
      %v1352 = vrot.slane %v1319, 4
      %v1353 = vrot.slane %v1320, 4
      %v1354 = vrot.slane %v1321, 4
      %1355 = vrot.lane.b32.xlu0 %v1352, 126
      %v1356 = vpop.permute.xlu0 %1355
      %1357 = vrot.lane.b32.xlu0 %v1353, 126
      %v1358 = vpop.permute.xlu0 %1357
      %1359 = vrot.lane.b32.xlu0 %v1354, 126
      %v1360 = vpop.permute.xlu0 %1359
      %v1361 = vsel %vm696, %v1356, %v1358
      %v1362 = vsel %vm696, %v1358, %v1360
      %v1368 = vrot.slane %v1322, 6
      %v1369 = vrot.slane %v1323, 6
      %v1370 = vrot.slane %v1324, 6
      %1371 = vrot.lane.b32.xlu0 %v1368, 112
      %v1372 = vpop.permute.xlu0 %1371
      %1373 = vrot.lane.b32.xlu0 %v1369, 112
      %v1374 = vpop.permute.xlu0 %1373
      %1375 = vrot.lane.b32.xlu0 %v1370, 112
      %v1376 = vpop.permute.xlu0 %1375
      %v1377 = vsel %vm713, %v1372, %v1374
      %v1378 = vsel %vm713, %v1374, %v1376
      %1381 = vrot.lane.b32.xlu0 %v1315, 111
      %v1382 = vpop.permute.xlu0 %1381
      %1383 = vrot.lane.b32.xlu0 %v1311, 111
      %v1384 = vpop.permute.xlu0 %1383
      %1385 = vrot.lane.b32.xlu0 %v1316, 111
      %v1386 = vpop.permute.xlu0 %1385
      %v1387 = vsel %vm727, %v1382, %v1384
      %v1388 = vsel %vm727, %v1384, %v1386
      %v1394 = vrot.slane %v1325, 2
      %v1395 = vrot.slane %v1326, 2
      %v1396 = vrot.slane %v1327, 2
      %1397 = vrot.lane.b32.xlu0 %v1394, 110
      %v1398 = vpop.permute.xlu0 %1397
      %1399 = vrot.lane.b32.xlu0 %v1395, 110
      %v1400 = vpop.permute.xlu0 %1399
      %1401 = vrot.lane.b32.xlu0 %v1396, 110
      %v1402 = vpop.permute.xlu0 %1401
      %v1403 = vsel %vm744, %v1398, %v1400
      %v1404 = vsel %vm744, %v1400, %v1402
      %v1410 = vrot.slane %v1328, 4
      %v1411 = vrot.slane %v1329, 4
      %v1412 = vrot.slane %v1330, 4
      %1413 = vrot.lane.b32.xlu0 %v1410, 96
      %v1414 = vpop.permute.xlu0 %1413
      %1415 = vrot.lane.b32.xlu0 %v1411, 96
      %v1416 = vpop.permute.xlu0 %1415
      %1417 = vrot.lane.b32.xlu0 %v1412, 96
      %v1418 = vpop.permute.xlu0 %1417
      %v1419 = vsel %vm761, %v1414, %v1416
      %v1420 = vsel %vm761, %v1416, %v1418
      %v1423 = vrot.slane %v1315, 6
      %v1424 = vrot.slane %v1311, 6
      %v1425 = vrot.slane %v1316, 6
      %1426 = vrot.lane.b32.xlu0 %v1423, 95
      %v1427 = vpop.permute.xlu0 %1426
      %1428 = vrot.lane.b32.xlu0 %v1424, 95
      %v1429 = vpop.permute.xlu0 %1428
      %1430 = vrot.lane.b32.xlu0 %v1425, 95
      %v1431 = vpop.permute.xlu0 %1430
      %v1432 = vsel %vm775, %v1427, %v1429
      %v1433 = vsel %vm775, %v1429, %v1431
      %1439 = vrot.lane.b32.xlu0 %v1331, 94
      %v1440 = vpop.permute.xlu0 %1439
      %1441 = vrot.lane.b32.xlu0 %v1332, 94
      %v1442 = vpop.permute.xlu0 %1441
      %1443 = vrot.lane.b32.xlu0 %v1333, 94
      %v1444 = vpop.permute.xlu0 %1443
      %v1445 = vsel %vm789, %v1440, %v1442
      %v1446 = vsel %vm789, %v1442, %v1444
      %v1447 = vsel %vm795, %v1317, %v1345
      %v1448 = vsel %vm795, %v1318, %v1346
      %v1449 = vsel %vm801, %v1345, %v1361
      %v1450 = vsel %vm801, %v1346, %v1362
      %v1451 = vsel %vm807, %v1361, %v1377
      %v1452 = vsel %vm807, %v1362, %v1378
      %v1453 = vsel %vm795, %v1387, %v1403
      %v1454 = vsel %vm795, %v1388, %v1404
      %v1455 = vsel %vm801, %v1403, %v1419
      %v1456 = vsel %vm801, %v1404, %v1420
      %v1457 = vsel %vm807, %v1419, %v1432
      %v1458 = vsel %vm807, %v1420, %v1433
      %v1459 = vld [vmem:[%s7] sm:$0xff]
      %v1460 = vld [vmem:[%s7 + $0x8] sm:$0xff]
      %v1461 = vld [vmem:[%s8] sm:$0xff]
      %v1462 = vld [vmem:[%s8 + $0x8] sm:$0xff]
      %1464 = vset.pattern.permute.xlu0 0
      %1465 = vperm.xlu0 %1464, %v1461
      %v1466 = vpop.permute.xlu0 %1465
      %1469 = vset.pattern.permute.xlu0 0
      %1470 = vperm.xlu0 %1469, %v1462
      %v1471 = vpop.permute.xlu0 %1470
      %vm1473 = vcmask 441344
      %v1475 = vsel %vm1473, %v1459, 0
      %v1478 = vsel %vm1473, %v1460, 0
      %v1480 = vsel %vm795, %v1445, 0
      %v1482 = vsel %vm795, %v1446, 0
      %1484 = vmatprep.subr.mxu0 %v1448
      %1485 = vmatpush1.msra.mxu0 %v1447
      %1486 = vmatprep.subr.mxu0 %v1450
      %1487 = vmatpush1.msra.mxu0 %v1449
      %1488 = vmatprep.subr.mxu0 %v1452
      %1489 = vmatpush1.msra.mxu0 %v1451
      %1490 = vmatprep.subr.mxu0 %v1454
      %1491 = vmatpush1.msra.mxu0 %v1453
      %1492 = vmatprep.subr.mxu0 %v1456
      %1493 = vmatpush1.msra.mxu0 %v1455
      %1494 = vmatprep.subr.mxu0 %v1458
      %1495 = vmatpush1.msra.mxu0 %v1457
      %1496 = vmatprep.subr.mxu0 %v1482
      %1497 = vmatpush1.msra.mxu0 %v1480
      %1498 = vmatprep.subr.mxu0 0.0
      %1499 = vmatpush1.msra.mxu0 0.0
      %1500 = vmatprep.subr.mxu0 0.0
      %1501 = vmatpush1.msra.mxu0 0.0
      %1502 = vmatprep.subr.mxu0 0.0
      %1503 = vmatpush1.msra.mxu0 0.0
      %1504 = vmatprep.subr.mxu0 0.0
      %1505 = vmatpush1.msra.mxu0 0.0
      %1506 = vmatprep.subr.mxu0 0.0
      %1507 = vmatpush1.msra.mxu0 0.0
      %1508 = vmatprep.subr.mxu0 0.0
      %1509 = vmatpush1.msra.mxu0 0.0
      %1510 = vmatprep.subr.mxu0 0.0
      %1511 = vmatpush1.msra.mxu0 0.0
      %1512 = vmatprep.subr.mxu0 0.0
      %1513 = vmatpush1.msra.mxu0 0.0
      %1514 = vmatprep.subr.mxu0 0.0
      %1515 = vmatpush1.msra.mxu0 0.0
      %1516 = vmatprep.subr.mxu0 0.0
      %1517 = vmatpush1.msra.mxu0 0.0
      %1518 = vmatprep.subr.mxu0 0.0
      %1519 = vmatpush1.msra.mxu0 0.0
      %1520 = vmatprep.subr.mxu0 0.0
      %1521 = vmatpush1.msra.mxu0 0.0
      %1522 = vmatprep.subr.mxu0 0.0
      %1523 = vmatpush1.msra.mxu0 0.0
      %1524 = vmatprep.subr.mxu0 0.0
      %1525 = vmatpush1.msra.mxu0 0.0
      %1526 = vmatprep.subr.mxu0 0.0
      %1527 = vmatpush1.msra.mxu0 0.0
      %1528 = vmatprep.subr.mxu0 0.0
      %1529 = vmatpush1.msra.mxu0 0.0
      %1530 = vmatprep.subr.mxu0 0.0
      %1531 = vmatpush1.msra.mxu0 0.0
      %1532 = vmatprep.subr.mxu0 0.0
      %1533 = vmatpush1.msra.mxu0 0.0
      %1534 = vmatprep.subr.mxu0 0.0
      %1535 = vmatpush1.msra.mxu0 0.0
      %1536 = vmatprep.subr.mxu0 0.0
      %1537 = vmatpush1.msra.mxu0 0.0
      %1538 = vmatprep.subr.mxu0 0.0
      %1539 = vmatpush1.msra.mxu0 0.0
      %1540 = vmatprep.subr.mxu0 0.0
      %1541 = vmatpush1.msra.mxu0 0.0
      %1542 = vmatprep.subr.mxu0 0.0
      %1543 = vmatpush1.msra.mxu0 0.0
      %1544 = vmatprep.subr.mxu0 0.0
      %1545 = vmatpush1.msra.mxu0 0.0
      %1546 = vmatprep.subr.mxu0 0.0
      %1547 = vmatpush1.msra.mxu0 0.0
      %1548 = vmatprep.mubr.f32.mxu0 0.0
      %1549 = vmatmul.mubr.f32.gmra.mrb[0].mxu0 %v1475
      %v1550 = vpop.f32.mrb[0].mxu0
      %v1551 = vadd.f32 %v1466, %v1550
      %v1552 = vpop.f32.mrb[0].mxu0
      %v1553 = vadd.f32 %v1466, %v1552
      %1554 = vmatprep.mubr.f32.mxu0 0.0
      %1555 = vmatmul.mubr.f32.gmra.mrb[0].mxu0 %v1478
      %v1556 = vpop.f32.mrb[0].mxu0
      %v1557 = vadd.f32 %v1471, %v1556
      %v1558 = vpop.f32.mrb[0].mxu0
      %v1559 = vadd.f32 %v1471, %v1558
      %1560 = vdwg.mxu0
      %v1561 = vmax.f32 %v1551, 0.0
      %v1562 = vmax.f32 %v1553, 0.0
      %v1563 = vmax.f32 %v1557, 0.0
      %v1564 = vmax.f32 %v1559, 0.0
      %1569 = vrot.lane.b32.xlu0 %v1561, 17
      %v1570 = vpop.permute.xlu0 %1569
      %1571 = vrot.lane.b32.xlu0 %v1562, 17
      %v1572 = vpop.permute.xlu0 %1571
      %1573 = vrot.lane.b32.xlu0 %v1563, 17
      %v1574 = vpop.permute.xlu0 %1573
      %1575 = vrot.lane.b32.xlu0 %v1564, 17
      %v1576 = vpop.permute.xlu0 %1575
      %v1577 = vsel %vm579, %v1570, %v1572
      %v1578 = vsel %vm579, %v1574, %v1576
      %v1585 = vsel %vm579, 0.0, %v1570
      %v1586 = vsel %vm579, 0.0, %v1574
      %v1587 = vsel %vm579, %v1572, 0.0
      %v1588 = vsel %vm579, %v1576, 0.0
      %v1589 = vmul.f32 %v1585, %v590
      %v1590 = vmul.f32 %v1577, %v594
      %v1591 = vmul.f32 %v1586, %v590
      %v1592 = vmul.f32 %v1578, %v594
      %v1593 = vmul.f32 %v1585, %v609
      %v1594 = vmul.f32 %v1577, %v613
      %v1595 = vmul.f32 %v1587, %v611
      %v1596 = vmul.f32 %v1586, %v609
      %v1597 = vmul.f32 %v1578, %v613
      %v1598 = vmul.f32 %v1588, %v611
      %v1599 = vmul.f32 %v1585, %v621
      %v1600 = vmul.f32 %v1577, %v625
      %v1601 = vmul.f32 %v1587, %v623
      %v1602 = vmul.f32 %v1586, %v621
      %v1603 = vmul.f32 %v1578, %v625
      %v1604 = vmul.f32 %v1588, %v623
      %v1605 = vmul.f32 %v1585, %v633
      %v1606 = vmul.f32 %v1577, %v637
      %v1607 = vmul.f32 %v1587, %v635
      %v1608 = vmul.f32 %v1586, %v633
      %v1609 = vmul.f32 %v1578, %v637
      %v1610 = vmul.f32 %v1588, %v635
      %v1611 = vmul.f32 %v1585, %v645
      %v1612 = vmul.f32 %v1577, %v649
      %v1613 = vmul.f32 %v1587, %v647
      %v1614 = vmul.f32 %v1586, %v645
      %v1615 = vmul.f32 %v1578, %v649
      %v1616 = vmul.f32 %v1588, %v647
      %v1617 = vmul.f32 %v1585, %v657
      %v1618 = vmul.f32 %v1577, %v661
      %v1619 = vmul.f32 %v1587, %v659
      %v1620 = vmul.f32 %v1586, %v657
      %v1621 = vmul.f32 %v1578, %v661
      %v1622 = vmul.f32 %v1588, %v659
      %1627 = vrot.lane.b32.xlu0 %v1585, 127
      %v1628 = vpop.permute.xlu0 %1627
      %1629 = vrot.lane.b32.xlu0 %v1577, 127
      %v1630 = vpop.permute.xlu0 %1629
      %1631 = vrot.lane.b32.xlu0 %v1587, 127
      %v1632 = vpop.permute.xlu0 %1631
      %1633 = vrot.lane.b32.xlu0 %v1586, 127
      %v1634 = vpop.permute.xlu0 %1633
      %1635 = vrot.lane.b32.xlu0 %v1578, 127
      %v1636 = vpop.permute.xlu0 %1635
      %1637 = vrot.lane.b32.xlu0 %v1588, 127
      %v1638 = vpop.permute.xlu0 %1637
      %v1639 = vsel %vm679, %v1628, %v1630
      %v1640 = vsel %vm679, %v1630, %v1632
      %v1641 = vsel %vm679, %v1634, %v1636
      %v1642 = vsel %vm679, %v1636, %v1638
      %1653 = vrot.lane.b32.xlu0 %v1593, 126
      %v1654 = vpop.permute.xlu0 %1653
      %1655 = vrot.lane.b32.xlu0 %v1594, 126
      %v1656 = vpop.permute.xlu0 %1655
      %1657 = vrot.lane.b32.xlu0 %v1595, 126
      %v1658 = vpop.permute.xlu0 %1657
      %1659 = vrot.lane.b32.xlu0 %v1596, 126
      %v1660 = vpop.permute.xlu0 %1659
      %1661 = vrot.lane.b32.xlu0 %v1597, 126
      %v1662 = vpop.permute.xlu0 %1661
      %1663 = vrot.lane.b32.xlu0 %v1598, 126
      %v1664 = vpop.permute.xlu0 %1663
      %v1665 = vsel %vm696, %v1654, %v1656
      %v1666 = vsel %vm696, %v1656, %v1658
      %v1667 = vsel %vm696, %v1660, %v1662
      %v1668 = vsel %vm696, %v1662, %v1664
      %1679 = vrot.lane.b32.xlu0 %v1599, 112
      %v1680 = vpop.permute.xlu0 %1679
      %1681 = vrot.lane.b32.xlu0 %v1600, 112
      %v1682 = vpop.permute.xlu0 %1681
      %1683 = vrot.lane.b32.xlu0 %v1601, 112
      %v1684 = vpop.permute.xlu0 %1683
      %1685 = vrot.lane.b32.xlu0 %v1602, 112
      %v1686 = vpop.permute.xlu0 %1685
      %1687 = vrot.lane.b32.xlu0 %v1603, 112
      %v1688 = vpop.permute.xlu0 %1687
      %1689 = vrot.lane.b32.xlu0 %v1604, 112
      %v1690 = vpop.permute.xlu0 %1689
      %v1691 = vsel %vm713, %v1680, %v1682
      %v1692 = vsel %vm713, %v1682, %v1684
      %v1693 = vsel %vm713, %v1686, %v1688
      %v1694 = vsel %vm713, %v1688, %v1690
      %1699 = vrot.lane.b32.xlu0 %v1585, 111
      %v1700 = vpop.permute.xlu0 %1699
      %1701 = vrot.lane.b32.xlu0 %v1577, 111
      %v1702 = vpop.permute.xlu0 %1701
      %1703 = vrot.lane.b32.xlu0 %v1587, 111
      %v1704 = vpop.permute.xlu0 %1703
      %1705 = vrot.lane.b32.xlu0 %v1586, 111
      %v1706 = vpop.permute.xlu0 %1705
      %1707 = vrot.lane.b32.xlu0 %v1578, 111
      %v1708 = vpop.permute.xlu0 %1707
      %1709 = vrot.lane.b32.xlu0 %v1588, 111
      %v1710 = vpop.permute.xlu0 %1709
      %v1711 = vsel %vm727, %v1700, %v1702
      %v1712 = vsel %vm727, %v1702, %v1704
      %v1713 = vsel %vm727, %v1706, %v1708
      %v1714 = vsel %vm727, %v1708, %v1710
      %1725 = vrot.lane.b32.xlu0 %v1605, 110
      %v1726 = vpop.permute.xlu0 %1725
      %1727 = vrot.lane.b32.xlu0 %v1606, 110
      %v1728 = vpop.permute.xlu0 %1727
      %1729 = vrot.lane.b32.xlu0 %v1607, 110
      %v1730 = vpop.permute.xlu0 %1729
      %1731 = vrot.lane.b32.xlu0 %v1608, 110
      %v1732 = vpop.permute.xlu0 %1731
      %1733 = vrot.lane.b32.xlu0 %v1609, 110
      %v1734 = vpop.permute.xlu0 %1733
      %1735 = vrot.lane.b32.xlu0 %v1610, 110
      %v1736 = vpop.permute.xlu0 %1735
      %v1737 = vsel %vm744, %v1726, %v1728
      %v1738 = vsel %vm744, %v1728, %v1730
      %v1739 = vsel %vm744, %v1732, %v1734
      %v1740 = vsel %vm744, %v1734, %v1736
      %1751 = vrot.lane.b32.xlu0 %v1611, 96
      %v1752 = vpop.permute.xlu0 %1751
      %1753 = vrot.lane.b32.xlu0 %v1612, 96
      %v1754 = vpop.permute.xlu0 %1753
      %1755 = vrot.lane.b32.xlu0 %v1613, 96
      %v1756 = vpop.permute.xlu0 %1755
      %1757 = vrot.lane.b32.xlu0 %v1614, 96
      %v1758 = vpop.permute.xlu0 %1757
      %1759 = vrot.lane.b32.xlu0 %v1615, 96
      %v1760 = vpop.permute.xlu0 %1759
      %1761 = vrot.lane.b32.xlu0 %v1616, 96
      %v1762 = vpop.permute.xlu0 %1761
      %v1763 = vsel %vm761, %v1752, %v1754
      %v1764 = vsel %vm761, %v1754, %v1756
      %v1765 = vsel %vm761, %v1758, %v1760
      %v1766 = vsel %vm761, %v1760, %v1762
      %1771 = vrot.lane.b32.xlu0 %v1585, 95
      %v1772 = vpop.permute.xlu0 %1771
      %1773 = vrot.lane.b32.xlu0 %v1577, 95
      %v1774 = vpop.permute.xlu0 %1773
      %1775 = vrot.lane.b32.xlu0 %v1587, 95
      %v1776 = vpop.permute.xlu0 %1775
      %1777 = vrot.lane.b32.xlu0 %v1586, 95
      %v1778 = vpop.permute.xlu0 %1777
      %1779 = vrot.lane.b32.xlu0 %v1578, 95
      %v1780 = vpop.permute.xlu0 %1779
      %1781 = vrot.lane.b32.xlu0 %v1588, 95
      %v1782 = vpop.permute.xlu0 %1781
      %v1783 = vsel %vm775, %v1772, %v1774
      %v1784 = vsel %vm775, %v1774, %v1776
      %v1785 = vsel %vm775, %v1778, %v1780
      %v1786 = vsel %vm775, %v1780, %v1782
      %1797 = vrot.lane.b32.xlu0 %v1617, 94
      %v1798 = vpop.permute.xlu0 %1797
      %1799 = vrot.lane.b32.xlu0 %v1618, 94
      %v1800 = vpop.permute.xlu0 %1799
      %1801 = vrot.lane.b32.xlu0 %v1619, 94
      %v1802 = vpop.permute.xlu0 %1801
      %1803 = vrot.lane.b32.xlu0 %v1620, 94
      %v1804 = vpop.permute.xlu0 %1803
      %1805 = vrot.lane.b32.xlu0 %v1621, 94
      %v1806 = vpop.permute.xlu0 %1805
      %1807 = vrot.lane.b32.xlu0 %v1622, 94
      %v1808 = vpop.permute.xlu0 %1807
      %v1809 = vsel %vm789, %v1798, %v1800
      %v1810 = vsel %vm789, %v1800, %v1802
      %v1811 = vsel %vm789, %v1804, %v1806
      %v1812 = vsel %vm789, %v1806, %v1808
      %v1817 = vld [vmem:[%s9] sm:$0xff]
      %v1818 = vld [vmem:[%s9 + $0x8] sm:$0xff]
      %v1819 = vld [vmem:[%s10] sm:$0xff]
      %1821 = vset.pattern.permute.xlu0 0
      %1822 = vperm.xlu0 %1821, %v1819
      %v1823 = vpop.permute.xlu0 %1822
      %v1826 = vsel %vm624, %v1818, 0
      %1828 = vmatprep.subr.mxu0 %v1590
      %1829 = vmatpush1.msra.mxu0 %v1589
      %1830 = vmatprep.subr.mxu0 %v1592
      %1831 = vmatpush1.msra.mxu0 %v1591
      %1832 = vmatprep.subr.mxu0 %v1640
      %1833 = vmatpush1.msra.mxu0 %v1639
      %1834 = vmatprep.subr.mxu0 %v1642
      %1835 = vmatpush1.msra.mxu0 %v1641
      %1836 = vmatprep.subr.mxu0 %v1666
      %1837 = vmatpush1.msra.mxu0 %v1665
      %1838 = vmatprep.subr.mxu0 %v1668
      %1839 = vmatpush1.msra.mxu0 %v1667
      %1840 = vmatprep.subr.mxu0 %v1692
      %1841 = vmatpush1.msra.mxu0 %v1691
      %1842 = vmatprep.subr.mxu0 %v1694
      %1843 = vmatpush1.msra.mxu0 %v1693
      %1844 = vmatprep.subr.mxu0 %v1712
      %1845 = vmatpush1.msra.mxu0 %v1711
      %1846 = vmatprep.subr.mxu0 %v1714
      %1847 = vmatpush1.msra.mxu0 %v1713
      %1848 = vmatprep.subr.mxu0 %v1738
      %1849 = vmatpush1.msra.mxu0 %v1737
      %1850 = vmatprep.subr.mxu0 %v1740
      %1851 = vmatpush1.msra.mxu0 %v1739
      %1852 = vmatprep.subr.mxu0 %v1764
      %1853 = vmatpush1.msra.mxu0 %v1763
      %1854 = vmatprep.subr.mxu0 %v1766
      %1855 = vmatpush1.msra.mxu0 %v1765
      %1856 = vmatprep.subr.mxu0 %v1784
      %1857 = vmatpush1.msra.mxu0 %v1783
      %1858 = vmatprep.subr.mxu0 %v1786
      %1859 = vmatpush1.msra.mxu0 %v1785
      %1860 = vmatprep.subr.mxu0 %v1810
      %1861 = vmatpush1.msra.mxu0 %v1809
      %1862 = vmatprep.subr.mxu0 %v1812
      %1863 = vmatpush1.msra.mxu0 %v1811
      %1864 = vmatprep.subr.mxu0 0.0
      %1865 = vmatpush1.msra.mxu0 0.0
      %1866 = vmatprep.subr.mxu0 0.0
      %1867 = vmatpush1.msra.mxu0 0.0
      %1868 = vmatprep.subr.mxu0 0.0
      %1869 = vmatpush1.msra.mxu0 0.0
      %1870 = vmatprep.subr.mxu0 0.0
      %1871 = vmatpush1.msra.mxu0 0.0
      %1872 = vmatprep.subr.mxu0 0.0
      %1873 = vmatpush1.msra.mxu0 0.0
      %1874 = vmatprep.subr.mxu0 0.0
      %1875 = vmatpush1.msra.mxu0 0.0
      %1876 = vmatprep.subr.mxu0 0.0
      %1877 = vmatpush1.msra.mxu0 0.0
      %1878 = vmatprep.subr.mxu0 0.0
      %1879 = vmatpush1.msra.mxu0 0.0
      %1880 = vmatprep.subr.mxu0 0.0
      %1881 = vmatpush1.msra.mxu0 0.0
      %1882 = vmatprep.subr.mxu0 0.0
      %1883 = vmatpush1.msra.mxu0 0.0
      %1884 = vmatprep.subr.mxu0 0.0
      %1885 = vmatpush1.msra.mxu0 0.0
      %1886 = vmatprep.subr.mxu0 0.0
      %1887 = vmatpush1.msra.mxu0 0.0
      %1888 = vmatprep.subr.mxu0 0.0
      %1889 = vmatpush1.msra.mxu0 0.0
      %1890 = vmatprep.subr.mxu0 0.0
      %1891 = vmatpush1.msra.mxu0 0.0
      %1892 = vmatprep.mubr.f32.mxu0 %v1826
      %1893 = vmatmul.mubr.f32.gmra.mrb[0].mxu0 %v1817
      %v1894 = vpop.f32.mrb[0].mxu0
      %v1895 = vadd.f32 %v1823, %v1894
      %v1896 = vpop.f32.mrb[0].mxu0
      %v1897 = vadd.f32 %v1823, %v1896
      %1898 = vdwg.mxu0
      %v1899 = vxor.u32 %v1895, 2147483648
      %v1900 = vxor.u32 %v1897, 2147483648
      %v1901 = vmul.f32 %v1899, 1.442695
      %v1902 = vpow.pop %v1901
      %v1903 = vmul.f32 %v1900, 1.442695
      %v1904 = vpow.pop %v1903
      %v1905 = vadd.f32 %v1902, 1.0
      %v1906 = vadd.f32 %v1904, 1.0
      %v1907 = vrcp.pop %v1905
      %v1908 = vmul.f32 1.0, %v1907
      %v1909 = vrcp.pop %v1906
      %v1910 = vmul.f32 1.0, %v1909
      %v1913 = vcombine.low %v1908, %v1910
      %v1915 = vunpack.c.l.s4 1966171168
      %v1916 = vunpack.c.0.s8 %v1915
      %v1917 = vlaneseq
      %v1918 = vshrl.u32 %v1917, 7
      %v1919 = vsub.s32 %v1916, %v1918
      %v1920 = vrot.slane %v1913, %v1919
      %v1922 = vunpack.c.l.s4 1966171168
      %v1923 = vunpack.c.0.s8 %v1922
      %v1924 = vlaneseq
      %v1925 = vshrl.u32 %v1924, 7
      %v1926 = vsub.s32 %v1923, %v1925
      %v1927 = vrot.slane %v1920, %v1926
      %v1929 = vlaneseq
      %vm1930 = vcmp.ge.s32.totalorder %v1929, 0
      %vm1931 = vcmp.lt.s32.totalorder %v1929, 256
      %vm1932 = vmand %vm1930, %vm1931
      %1933 = vst.msk [vmem:[%s569] sm:$0x3] %vm1932, %v1927
      %v1934 = vrot.slane %v1908, 2
      %v1935 = vrot.slane %v1910, 2
      %v1938 = vsel %vm795, %v1303, %v1934
      %v1939 = vsel %vm795, %v1304, %v1935
      %1942 = vrot.lane.b32.xlu0 %v1938, 17
      %v1943 = vpop.permute.xlu0 %1942
      %1944 = vrot.lane.b32.xlu0 %v1939, 17
      %v1945 = vpop.permute.xlu0 %1944
      %v1946 = vsel %vm579, %v1943, %v1945
      %v1950 = vsel %vm579, 0.0, %v1943
      %v1951 = vsel %vm579, %v1945, 0.0
      %v1952 = vmul.f32 %v1950, %v590
      %v1953 = vmul.f32 %v1946, %v594
      %v1954 = vmul.f32 %v1950, %v609
      %v1955 = vmul.f32 %v1946, %v613
      %v1956 = vmul.f32 %v1951, %v611
      %v1957 = vmul.f32 %v1950, %v621
      %v1958 = vmul.f32 %v1946, %v625
      %v1959 = vmul.f32 %v1951, %v623
      %v1960 = vmul.f32 %v1950, %v633
      %v1961 = vmul.f32 %v1946, %v637
      %v1962 = vmul.f32 %v1951, %v635
      %v1963 = vmul.f32 %v1950, %v645
      %v1964 = vmul.f32 %v1946, %v649
      %v1965 = vmul.f32 %v1951, %v647
      %v1966 = vmul.f32 %v1950, %v657
      %v1967 = vmul.f32 %v1946, %v661
      %v1968 = vmul.f32 %v1951, %v659
      %v1971 = vrot.slane %v1950, 1
      %v1972 = vrot.slane %v1946, 1
      %v1973 = vrot.slane %v1951, 1
      %1974 = vrot.lane.b32.xlu0 %v1971, 127
      %v1975 = vpop.permute.xlu0 %1974
      %1976 = vrot.lane.b32.xlu0 %v1972, 127
      %v1977 = vpop.permute.xlu0 %1976
      %1978 = vrot.lane.b32.xlu0 %v1973, 127
      %v1979 = vpop.permute.xlu0 %1978
      %v1980 = vsel %vm679, %v1975, %v1977
      %v1981 = vsel %vm679, %v1977, %v1979
      %v1987 = vrot.slane %v1954, 2
      %v1988 = vrot.slane %v1955, 2
      %v1989 = vrot.slane %v1956, 2
      %1990 = vrot.lane.b32.xlu0 %v1987, 126
      %v1991 = vpop.permute.xlu0 %1990
      %1992 = vrot.lane.b32.xlu0 %v1988, 126
      %v1993 = vpop.permute.xlu0 %1992
      %1994 = vrot.lane.b32.xlu0 %v1989, 126
      %v1995 = vpop.permute.xlu0 %1994
      %v1996 = vsel %vm696, %v1991, %v1993
      %v1997 = vsel %vm696, %v1993, %v1995
      %v2003 = vrot.slane %v1957, 3
      %v2004 = vrot.slane %v1958, 3
      %v2005 = vrot.slane %v1959, 3
      %2006 = vrot.lane.b32.xlu0 %v2003, 112
      %v2007 = vpop.permute.xlu0 %2006
      %2008 = vrot.lane.b32.xlu0 %v2004, 112
      %v2009 = vpop.permute.xlu0 %2008
      %2010 = vrot.lane.b32.xlu0 %v2005, 112
      %v2011 = vpop.permute.xlu0 %2010
      %v2012 = vsel %vm713, %v2007, %v2009
      %v2013 = vsel %vm713, %v2009, %v2011
      %v2016 = vrot.slane %v1950, 4
      %v2017 = vrot.slane %v1946, 4
      %v2018 = vrot.slane %v1951, 4
      %2019 = vrot.lane.b32.xlu0 %v2016, 111
      %v2020 = vpop.permute.xlu0 %2019
      %2021 = vrot.lane.b32.xlu0 %v2017, 111
      %v2022 = vpop.permute.xlu0 %2021
      %2023 = vrot.lane.b32.xlu0 %v2018, 111
      %v2024 = vpop.permute.xlu0 %2023
      %v2025 = vsel %vm727, %v2020, %v2022
      %v2026 = vsel %vm727, %v2022, %v2024
      %v2032 = vrot.slane %v1960, 5
      %v2033 = vrot.slane %v1961, 5
      %v2034 = vrot.slane %v1962, 5
      %2035 = vrot.lane.b32.xlu0 %v2032, 110
      %v2036 = vpop.permute.xlu0 %2035
      %2037 = vrot.lane.b32.xlu0 %v2033, 110
      %v2038 = vpop.permute.xlu0 %2037
      %2039 = vrot.lane.b32.xlu0 %v2034, 110
      %v2040 = vpop.permute.xlu0 %2039
      %v2041 = vsel %vm744, %v2036, %v2038
      %v2042 = vsel %vm744, %v2038, %v2040
      %v2048 = vrot.slane %v1963, 6
      %v2049 = vrot.slane %v1964, 6
      %v2050 = vrot.slane %v1965, 6
      %2051 = vrot.lane.b32.xlu0 %v2048, 96
      %v2052 = vpop.permute.xlu0 %2051
      %2053 = vrot.lane.b32.xlu0 %v2049, 96
      %v2054 = vpop.permute.xlu0 %2053
      %2055 = vrot.lane.b32.xlu0 %v2050, 96
      %v2056 = vpop.permute.xlu0 %2055
      %v2057 = vsel %vm761, %v2052, %v2054
      %v2058 = vsel %vm761, %v2054, %v2056
      %v2061 = vrot.slane %v1950, 7
      %v2062 = vrot.slane %v1946, 7
      %v2063 = vrot.slane %v1951, 7
      %2064 = vrot.lane.b32.xlu0 %v2061, 95
      %v2065 = vpop.permute.xlu0 %2064
      %2066 = vrot.lane.b32.xlu0 %v2062, 95
      %v2067 = vpop.permute.xlu0 %2066
      %2068 = vrot.lane.b32.xlu0 %v2063, 95
      %v2069 = vpop.permute.xlu0 %2068
      %v2070 = vsel %vm775, %v2065, %v2067
      %v2071 = vsel %vm775, %v2067, %v2069
      %2077 = vrot.lane.b32.xlu0 %v1966, 94
      %v2078 = vpop.permute.xlu0 %2077
      %2079 = vrot.lane.b32.xlu0 %v1967, 94
      %v2080 = vpop.permute.xlu0 %2079
      %2081 = vrot.lane.b32.xlu0 %v1968, 94
      %v2082 = vpop.permute.xlu0 %2081
      %v2083 = vsel %vm789, %v2078, %v2080
      %v2084 = vsel %vm789, %v2080, %v2082
      %v2085 = vsel %vm804, %v1952, %v1980
      %v2086 = vsel %vm804, %v1953, %v1981
      %v2087 = vsel %vm795, %v1980, %v1996
      %v2088 = vsel %vm795, %v1981, %v1997
      %v2089 = vsel %vm810, %v1996, %v2012
      %v2090 = vsel %vm810, %v1997, %v2013
      %v2091 = vsel %vm801, %v2012, %v2025
      %v2092 = vsel %vm801, %v2013, %v2026
      %v2093 = vsel %vm792, %v2025, %v2041
      %v2094 = vsel %vm792, %v2026, %v2042
      %v2095 = vsel %vm807, %v2041, %v2057
      %v2096 = vsel %vm807, %v2042, %v2058
      %v2097 = vsel %vm798, %v2057, %v2070
      %v2098 = vsel %vm798, %v2058, %v2071
      %v2099 = vld [vmem:[%s11] sm:$0xff]
      %v2100 = vld [vmem:[%s11 + $0x8] sm:$0xff]
      %v2101 = vld [vmem:[%s12] sm:$0xff]
      %v2102 = vld [vmem:[%s12 + $0x8] sm:$0xff]
      %2104 = vset.pattern.permute.xlu0 0
      %2105 = vperm.xlu0 %2104, %v2101
      %v2106 = vpop.permute.xlu0 %2105
      %2109 = vset.pattern.permute.xlu0 0
      %2110 = vperm.xlu0 %2109, %v2102
      %v2111 = vpop.permute.xlu0 %2110
      %vm2113 = vcmask 515072
      %v2115 = vsel %vm2113, %v2099, 0
      %v2118 = vsel %vm2113, %v2100, 0
      %v2120 = vsel %vm804, %v2083, 0
      %v2122 = vsel %vm804, %v2084, 0
      %2124 = vmatprep.subr.mxu0 %v2086
      %2125 = vmatpush1.msra.mxu0 %v2085
      %2126 = vmatprep.subr.mxu0 %v2088
      %2127 = vmatpush1.msra.mxu0 %v2087
      %2128 = vmatprep.subr.mxu0 %v2090
      %2129 = vmatpush1.msra.mxu0 %v2089
      %2130 = vmatprep.subr.mxu0 %v2092
      %2131 = vmatpush1.msra.mxu0 %v2091
      %2132 = vmatprep.subr.mxu0 %v2094
      %2133 = vmatpush1.msra.mxu0 %v2093
      %2134 = vmatprep.subr.mxu0 %v2096
      %2135 = vmatpush1.msra.mxu0 %v2095
      %2136 = vmatprep.subr.mxu0 %v2098
      %2137 = vmatpush1.msra.mxu0 %v2097
      %2138 = vmatprep.subr.mxu0 %v2122
      %2139 = vmatpush1.msra.mxu0 %v2120
      %2140 = vmatprep.subr.mxu0 0.0
      %2141 = vmatpush1.msra.mxu0 0.0
      %2142 = vmatprep.subr.mxu0 0.0
      %2143 = vmatpush1.msra.mxu0 0.0
      %2144 = vmatprep.subr.mxu0 0.0
      %2145 = vmatpush1.msra.mxu0 0.0
      %2146 = vmatprep.subr.mxu0 0.0
      %2147 = vmatpush1.msra.mxu0 0.0
      %2148 = vmatprep.subr.mxu0 0.0
      %2149 = vmatpush1.msra.mxu0 0.0
      %2150 = vmatprep.subr.mxu0 0.0
      %2151 = vmatpush1.msra.mxu0 0.0
      %2152 = vmatprep.subr.mxu0 0.0
      %2153 = vmatpush1.msra.mxu0 0.0
      %2154 = vmatprep.subr.mxu0 0.0
      %2155 = vmatpush1.msra.mxu0 0.0
      %2156 = vmatprep.subr.mxu0 0.0
      %2157 = vmatpush1.msra.mxu0 0.0
      %2158 = vmatprep.subr.mxu0 0.0
      %2159 = vmatpush1.msra.mxu0 0.0
      %2160 = vmatprep.subr.mxu0 0.0
      %2161 = vmatpush1.msra.mxu0 0.0
      %2162 = vmatprep.subr.mxu0 0.0
      %2163 = vmatpush1.msra.mxu0 0.0
      %2164 = vmatprep.subr.mxu0 0.0
      %2165 = vmatpush1.msra.mxu0 0.0
      %2166 = vmatprep.subr.mxu0 0.0
      %2167 = vmatpush1.msra.mxu0 0.0
      %2168 = vmatprep.subr.mxu0 0.0
      %2169 = vmatpush1.msra.mxu0 0.0
      %2170 = vmatprep.subr.mxu0 0.0
      %2171 = vmatpush1.msra.mxu0 0.0
      %2172 = vmatprep.subr.mxu0 0.0
      %2173 = vmatpush1.msra.mxu0 0.0
      %2174 = vmatprep.subr.mxu0 0.0
      %2175 = vmatpush1.msra.mxu0 0.0
      %2176 = vmatprep.subr.mxu0 0.0
      %2177 = vmatpush1.msra.mxu0 0.0
      %2178 = vmatprep.subr.mxu0 0.0
      %2179 = vmatpush1.msra.mxu0 0.0
      %2180 = vmatprep.subr.mxu0 0.0
      %2181 = vmatpush1.msra.mxu0 0.0
      %2182 = vmatprep.subr.mxu0 0.0
      %2183 = vmatpush1.msra.mxu0 0.0
      %2184 = vmatprep.subr.mxu0 0.0
      %2185 = vmatpush1.msra.mxu0 0.0
      %2186 = vmatprep.subr.mxu0 0.0
      %2187 = vmatpush1.msra.mxu0 0.0
      %2188 = vmatprep.mubr.f32.mxu0 0.0
      %2189 = vmatmul.mubr.f32.gmra.mrb[0].mxu0 %v2115
      %v2190 = vpop.f32.mrb[0].mxu0
      %v2191 = vadd.f32 %v2106, %v2190
      %v2192 = vpop.f32.mrb[0].mxu0
      %v2193 = vadd.f32 %v2106, %v2192
      %2194 = vmatprep.mubr.f32.mxu0 0.0
      %2195 = vmatmul.mubr.f32.gmra.mrb[0].mxu0 %v2118
      %v2196 = vpop.f32.mrb[0].mxu0
      %v2197 = vadd.f32 %v2111, %v2196
      %v2198 = vpop.f32.mrb[0].mxu0
      %v2199 = vadd.f32 %v2111, %v2198
      %2200 = vdwg.mxu0
      %v2201 = vmax.f32 %v2191, 0.0
      %v2202 = vmax.f32 %v2193, 0.0
      %v2203 = vmax.f32 %v2197, 0.0
      %v2204 = vmax.f32 %v2199, 0.0
      %2209 = vrot.lane.b32.xlu0 %v2201, 17
      %v2210 = vpop.permute.xlu0 %2209
      %2211 = vrot.lane.b32.xlu0 %v2202, 17
      %v2212 = vpop.permute.xlu0 %2211
      %2213 = vrot.lane.b32.xlu0 %v2203, 17
      %v2214 = vpop.permute.xlu0 %2213
      %2215 = vrot.lane.b32.xlu0 %v2204, 17
      %v2216 = vpop.permute.xlu0 %2215
      %v2217 = vsel %vm579, %v2210, %v2212
      %v2218 = vsel %vm579, %v2214, %v2216
      %v2225 = vsel %vm579, 0.0, %v2210
      %v2226 = vsel %vm579, 0.0, %v2214
      %v2227 = vsel %vm579, %v2212, 0.0
      %v2228 = vsel %vm579, %v2216, 0.0
      %v2229 = vmul.f32 %v2225, %v590
      %v2230 = vmul.f32 %v2217, %v594
      %v2231 = vmul.f32 %v2226, %v590
      %v2232 = vmul.f32 %v2218, %v594
      %v2233 = vmul.f32 %v2225, %v609
      %v2234 = vmul.f32 %v2217, %v613
      %v2235 = vmul.f32 %v2227, %v611
      %v2236 = vmul.f32 %v2226, %v609
      %v2237 = vmul.f32 %v2218, %v613
      %v2238 = vmul.f32 %v2228, %v611
      %v2239 = vmul.f32 %v2225, %v621
      %v2240 = vmul.f32 %v2217, %v625
      %v2241 = vmul.f32 %v2227, %v623
      %v2242 = vmul.f32 %v2226, %v621
      %v2243 = vmul.f32 %v2218, %v625
      %v2244 = vmul.f32 %v2228, %v623
      %v2245 = vmul.f32 %v2225, %v633
      %v2246 = vmul.f32 %v2217, %v637
      %v2247 = vmul.f32 %v2227, %v635
      %v2248 = vmul.f32 %v2226, %v633
      %v2249 = vmul.f32 %v2218, %v637
      %v2250 = vmul.f32 %v2228, %v635
      %v2251 = vmul.f32 %v2225, %v645
      %v2252 = vmul.f32 %v2217, %v649
      %v2253 = vmul.f32 %v2227, %v647
      %v2254 = vmul.f32 %v2226, %v645
      %v2255 = vmul.f32 %v2218, %v649
      %v2256 = vmul.f32 %v2228, %v647
      %v2257 = vmul.f32 %v2225, %v657
      %v2258 = vmul.f32 %v2217, %v661
      %v2259 = vmul.f32 %v2227, %v659
      %v2260 = vmul.f32 %v2226, %v657
      %v2261 = vmul.f32 %v2218, %v661
      %v2262 = vmul.f32 %v2228, %v659
      %2267 = vrot.lane.b32.xlu0 %v2225, 127
      %v2268 = vpop.permute.xlu0 %2267
      %2269 = vrot.lane.b32.xlu0 %v2217, 127
      %v2270 = vpop.permute.xlu0 %2269
      %2271 = vrot.lane.b32.xlu0 %v2227, 127
      %v2272 = vpop.permute.xlu0 %2271
      %2273 = vrot.lane.b32.xlu0 %v2226, 127
      %v2274 = vpop.permute.xlu0 %2273
      %2275 = vrot.lane.b32.xlu0 %v2218, 127
      %v2276 = vpop.permute.xlu0 %2275
      %2277 = vrot.lane.b32.xlu0 %v2228, 127
      %v2278 = vpop.permute.xlu0 %2277
      %v2279 = vsel %vm679, %v2268, %v2270
      %v2280 = vsel %vm679, %v2270, %v2272
      %v2281 = vsel %vm679, %v2274, %v2276
      %v2282 = vsel %vm679, %v2276, %v2278
      %2293 = vrot.lane.b32.xlu0 %v2233, 126
      %v2294 = vpop.permute.xlu0 %2293
      %2295 = vrot.lane.b32.xlu0 %v2234, 126
      %v2296 = vpop.permute.xlu0 %2295
      %2297 = vrot.lane.b32.xlu0 %v2235, 126
      %v2298 = vpop.permute.xlu0 %2297
      %2299 = vrot.lane.b32.xlu0 %v2236, 126
      %v2300 = vpop.permute.xlu0 %2299
      %2301 = vrot.lane.b32.xlu0 %v2237, 126
      %v2302 = vpop.permute.xlu0 %2301
      %2303 = vrot.lane.b32.xlu0 %v2238, 126
      %v2304 = vpop.permute.xlu0 %2303
      %v2305 = vsel %vm696, %v2294, %v2296
      %v2306 = vsel %vm696, %v2296, %v2298
      %v2307 = vsel %vm696, %v2300, %v2302
      %v2308 = vsel %vm696, %v2302, %v2304
      %2319 = vrot.lane.b32.xlu0 %v2239, 112
      %v2320 = vpop.permute.xlu0 %2319
      %2321 = vrot.lane.b32.xlu0 %v2240, 112
      %v2322 = vpop.permute.xlu0 %2321
      %2323 = vrot.lane.b32.xlu0 %v2241, 112
      %v2324 = vpop.permute.xlu0 %2323
      %2325 = vrot.lane.b32.xlu0 %v2242, 112
      %v2326 = vpop.permute.xlu0 %2325
      %2327 = vrot.lane.b32.xlu0 %v2243, 112
      %v2328 = vpop.permute.xlu0 %2327
      %2329 = vrot.lane.b32.xlu0 %v2244, 112
      %v2330 = vpop.permute.xlu0 %2329
      %v2331 = vsel %vm713, %v2320, %v2322
      %v2332 = vsel %vm713, %v2322, %v2324
      %v2333 = vsel %vm713, %v2326, %v2328
      %v2334 = vsel %vm713, %v2328, %v2330
      %2339 = vrot.lane.b32.xlu0 %v2225, 111
      %v2340 = vpop.permute.xlu0 %2339
      %2341 = vrot.lane.b32.xlu0 %v2217, 111
      %v2342 = vpop.permute.xlu0 %2341
      %2343 = vrot.lane.b32.xlu0 %v2227, 111
      %v2344 = vpop.permute.xlu0 %2343
      %2345 = vrot.lane.b32.xlu0 %v2226, 111
      %v2346 = vpop.permute.xlu0 %2345
      %2347 = vrot.lane.b32.xlu0 %v2218, 111
      %v2348 = vpop.permute.xlu0 %2347
      %2349 = vrot.lane.b32.xlu0 %v2228, 111
      %v2350 = vpop.permute.xlu0 %2349
      %v2351 = vsel %vm727, %v2340, %v2342
      %v2352 = vsel %vm727, %v2342, %v2344
      %v2353 = vsel %vm727, %v2346, %v2348
      %v2354 = vsel %vm727, %v2348, %v2350
      %2365 = vrot.lane.b32.xlu0 %v2245, 110
      %v2366 = vpop.permute.xlu0 %2365
      %2367 = vrot.lane.b32.xlu0 %v2246, 110
      %v2368 = vpop.permute.xlu0 %2367
      %2369 = vrot.lane.b32.xlu0 %v2247, 110
      %v2370 = vpop.permute.xlu0 %2369
      %2371 = vrot.lane.b32.xlu0 %v2248, 110
      %v2372 = vpop.permute.xlu0 %2371
      %2373 = vrot.lane.b32.xlu0 %v2249, 110
      %v2374 = vpop.permute.xlu0 %2373
      %2375 = vrot.lane.b32.xlu0 %v2250, 110
      %v2376 = vpop.permute.xlu0 %2375
      %v2377 = vsel %vm744, %v2366, %v2368
      %v2378 = vsel %vm744, %v2368, %v2370
      %v2379 = vsel %vm744, %v2372, %v2374
      %v2380 = vsel %vm744, %v2374, %v2376
      %2391 = vrot.lane.b32.xlu0 %v2251, 96
      %v2392 = vpop.permute.xlu0 %2391
      %2393 = vrot.lane.b32.xlu0 %v2252, 96
      %v2394 = vpop.permute.xlu0 %2393
      %2395 = vrot.lane.b32.xlu0 %v2253, 96
      %v2396 = vpop.permute.xlu0 %2395
      %2397 = vrot.lane.b32.xlu0 %v2254, 96
      %v2398 = vpop.permute.xlu0 %2397
      %2399 = vrot.lane.b32.xlu0 %v2255, 96
      %v2400 = vpop.permute.xlu0 %2399
      %2401 = vrot.lane.b32.xlu0 %v2256, 96
      %v2402 = vpop.permute.xlu0 %2401
      %v2403 = vsel %vm761, %v2392, %v2394
      %v2404 = vsel %vm761, %v2394, %v2396
      %v2405 = vsel %vm761, %v2398, %v2400
      %v2406 = vsel %vm761, %v2400, %v2402
      %2411 = vrot.lane.b32.xlu0 %v2225, 95
      %v2412 = vpop.permute.xlu0 %2411
      %2413 = vrot.lane.b32.xlu0 %v2217, 95
      %v2414 = vpop.permute.xlu0 %2413
      %2415 = vrot.lane.b32.xlu0 %v2227, 95
      %v2416 = vpop.permute.xlu0 %2415
      %2417 = vrot.lane.b32.xlu0 %v2226, 95
      %v2418 = vpop.permute.xlu0 %2417
      %2419 = vrot.lane.b32.xlu0 %v2218, 95
      %v2420 = vpop.permute.xlu0 %2419
      %2421 = vrot.lane.b32.xlu0 %v2228, 95
      %v2422 = vpop.permute.xlu0 %2421
      %v2423 = vsel %vm775, %v2412, %v2414
      %v2424 = vsel %vm775, %v2414, %v2416
      %v2425 = vsel %vm775, %v2418, %v2420
      %v2426 = vsel %vm775, %v2420, %v2422
      %2437 = vrot.lane.b32.xlu0 %v2257, 94
      %v2438 = vpop.permute.xlu0 %2437
      %2439 = vrot.lane.b32.xlu0 %v2258, 94
      %v2440 = vpop.permute.xlu0 %2439
      %2441 = vrot.lane.b32.xlu0 %v2259, 94
      %v2442 = vpop.permute.xlu0 %2441
      %2443 = vrot.lane.b32.xlu0 %v2260, 94
      %v2444 = vpop.permute.xlu0 %2443
      %2445 = vrot.lane.b32.xlu0 %v2261, 94
      %v2446 = vpop.permute.xlu0 %2445
      %2447 = vrot.lane.b32.xlu0 %v2262, 94
      %v2448 = vpop.permute.xlu0 %2447
      %v2449 = vsel %vm789, %v2438, %v2440
      %v2450 = vsel %vm789, %v2440, %v2442
      %v2451 = vsel %vm789, %v2444, %v2446
      %v2452 = vsel %vm789, %v2446, %v2448
      %v2457 = vld [vmem:[%s13] sm:$0xff]
      %v2458 = vld [vmem:[%s13 + $0x8] sm:$0xff]
      %v2459 = vld [vmem:[%s14] sm:$0xff]
      %2461 = vset.pattern.permute.xlu0 0
      %2462 = vperm.xlu0 %2461, %v2459
      %v2463 = vpop.permute.xlu0 %2462
      %v2466 = vsel %vm624, %v2458, 0
      %2468 = vmatprep.subr.mxu0 %v2230
      %2469 = vmatpush1.msra.mxu0 %v2229
      %2470 = vmatprep.subr.mxu0 %v2232
      %2471 = vmatpush1.msra.mxu0 %v2231
      %2472 = vmatprep.subr.mxu0 %v2280
      %2473 = vmatpush1.msra.mxu0 %v2279
      %2474 = vmatprep.subr.mxu0 %v2282
      %2475 = vmatpush1.msra.mxu0 %v2281
      %2476 = vmatprep.subr.mxu0 %v2306
      %2477 = vmatpush1.msra.mxu0 %v2305
      %2478 = vmatprep.subr.mxu0 %v2308
      %2479 = vmatpush1.msra.mxu0 %v2307
      %2480 = vmatprep.subr.mxu0 %v2332
      %2481 = vmatpush1.msra.mxu0 %v2331
      %2482 = vmatprep.subr.mxu0 %v2334
      %2483 = vmatpush1.msra.mxu0 %v2333
      %2484 = vmatprep.subr.mxu0 %v2352
      %2485 = vmatpush1.msra.mxu0 %v2351
      %2486 = vmatprep.subr.mxu0 %v2354
      %2487 = vmatpush1.msra.mxu0 %v2353
      %2488 = vmatprep.subr.mxu0 %v2378
      %2489 = vmatpush1.msra.mxu0 %v2377
      %2490 = vmatprep.subr.mxu0 %v2380
      %2491 = vmatpush1.msra.mxu0 %v2379
      %2492 = vmatprep.subr.mxu0 %v2404
      %2493 = vmatpush1.msra.mxu0 %v2403
      %2494 = vmatprep.subr.mxu0 %v2406
      %2495 = vmatpush1.msra.mxu0 %v2405
      %2496 = vmatprep.subr.mxu0 %v2424
      %2497 = vmatpush1.msra.mxu0 %v2423
      %2498 = vmatprep.subr.mxu0 %v2426
      %2499 = vmatpush1.msra.mxu0 %v2425
      %2500 = vmatprep.subr.mxu0 %v2450
      %2501 = vmatpush1.msra.mxu0 %v2449
      %2502 = vmatprep.subr.mxu0 %v2452
      %2503 = vmatpush1.msra.mxu0 %v2451
      %2504 = vmatprep.subr.mxu0 0.0
      %2505 = vmatpush1.msra.mxu0 0.0
      %2506 = vmatprep.subr.mxu0 0.0
      %2507 = vmatpush1.msra.mxu0 0.0
      %2508 = vmatprep.subr.mxu0 0.0
      %2509 = vmatpush1.msra.mxu0 0.0
      %2510 = vmatprep.subr.mxu0 0.0
      %2511 = vmatpush1.msra.mxu0 0.0
      %2512 = vmatprep.subr.mxu0 0.0
      %2513 = vmatpush1.msra.mxu0 0.0
      %2514 = vmatprep.subr.mxu0 0.0
      %2515 = vmatpush1.msra.mxu0 0.0
      %2516 = vmatprep.subr.mxu0 0.0
      %2517 = vmatpush1.msra.mxu0 0.0
      %2518 = vmatprep.subr.mxu0 0.0
      %2519 = vmatpush1.msra.mxu0 0.0
      %2520 = vmatprep.subr.mxu0 0.0
      %2521 = vmatpush1.msra.mxu0 0.0
      %2522 = vmatprep.subr.mxu0 0.0
      %2523 = vmatpush1.msra.mxu0 0.0
      %2524 = vmatprep.subr.mxu0 0.0
      %2525 = vmatpush1.msra.mxu0 0.0
      %2526 = vmatprep.subr.mxu0 0.0
      %2527 = vmatpush1.msra.mxu0 0.0
      %2528 = vmatprep.subr.mxu0 0.0
      %2529 = vmatpush1.msra.mxu0 0.0
      %2530 = vmatprep.subr.mxu0 0.0
      %2531 = vmatpush1.msra.mxu0 0.0
      %2532 = vmatprep.mubr.f32.mxu0 %v2466
      %2533 = vmatmul.mubr.f32.gmra.mrb[0].mxu0 %v2457
      %v2534 = vpop.f32.mrb[0].mxu0
      %v2535 = vadd.f32 %v2463, %v2534
      %v2536 = vpop.f32.mrb[0].mxu0
      %v2537 = vadd.f32 %v2463, %v2536
      %2538 = vdwg.mxu0
      %v2539 = vxor.u32 %v2535, 2147483648
      %v2540 = vxor.u32 %v2537, 2147483648
      %v2541 = vmul.f32 %v2539, 1.442695
      %v2542 = vpow.pop %v2541
      %v2543 = vmul.f32 %v2540, 1.442695
      %v2544 = vpow.pop %v2543
      %v2545 = vadd.f32 %v2542, 1.0
      %v2546 = vadd.f32 %v2544, 1.0
      %v2547 = vrcp.pop %v2545
      %v2548 = vmul.f32 1.0, %v2547
      %v2549 = vrcp.pop %v2546
      %v2550 = vmul.f32 1.0, %v2549
      %v2553 = vcombine.low %v2548, %v2550
      %v2555 = vunpack.c.l.s4 1966171168
      %v2556 = vunpack.c.0.s8 %v2555
      %v2557 = vlaneseq
      %v2558 = vshrl.u32 %v2557, 7
      %v2559 = vsub.s32 %v2556, %v2558
      %v2560 = vrot.slane %v2553, %v2559
      %v2562 = vunpack.c.l.s4 1966171168
      %v2563 = vunpack.c.0.s8 %v2562
      %v2564 = vlaneseq
      %v2565 = vshrl.u32 %v2564, 7
      %v2566 = vsub.s32 %v2563, %v2565
      %v2567 = vrot.slane %v2560, %v2566
      %2569 = vst.msk [vmem:[%s560] sm:$0x3] %vm1932, %v2567
      %p2570 = scmp.lt.s32.totalorder %s29, 1
      %s2571 = scalar_select %p2570, %s29, 1
      %s2572 = smul.addr %s2571, 2
      %s2573 = scalar_lea.vmem %s15, %s2572
      %p2574 = scmp.lt.s32.totalorder %s29, 1
      %s2575 = scalar_select %p2574, %s29, 1
      %s2576 = smul.addr %s2575, 2
      %s2577 = smul.addr %s2576, 4
      %s2578 = scalar_lea.vmem %s16, %s2577
      %p2579 = scmp.lt.s32.totalorder %s29, 1
      %s2580 = scalar_select %p2579, %s29, 1
      %s2581 = smul.addr %s2580, 2
      %s2582 = scalar_lea.vmem %s17, %s2581
      // Predicated region
      $region81: #{matting_net_forward.1} parent=79 // pred_check
        %p2583 = pneg %p367
      $region82: #{matting_net_forward.1} parent=79 // pred_check_branch
        %2585 = sbr.rel (%p2583) target = $region84
      $region83: #{matting_net_forward.1} parent=79 // pred_region
        _
      $region84: #{matting_net_forward.1} parent=79 // pred_fallthru
        _
      // Predicated region
      $region85: #{matting_net_forward.1} parent=79 // pred_check
        %p2586 = pneg %p393
      $region86: #{matting_net_forward.1} parent=79 // pred_check_branch
        %2588 = sbr.rel (%p2586) target = $region88
      $region87: #{matting_net_forward.1} parent=79 // pred_region
        _
      $region88: #{matting_net_forward.1} parent=79 // pred_fallthru
        _
      // Predicated region
      $region89: #{matting_net_forward.1} parent=79 // pred_check
        %p2589 = pneg %p419
      $region90: #{matting_net_forward.1} parent=79 // pred_check_branch
        %2591 = sbr.rel (%p2589) target = $region92
      $region91: #{matting_net_forward.1} parent=79 // pred_region
        _
      $region92: #{matting_net_forward.1} parent=79 // pred_fallthru
        _
    $region80: #{matting_net_forward.1} parent=5 // pred_fallthru
      _
    %p2592 = scmp.le.s32.totalorder 2, %s24
    // Predicated region
    $region93: #{matting_net_forward.1} parent=5 // pred_check
      %p2593 = pneg %p2592
    $region94: #{matting_net_forward.1} parent=5 // pred_check_branch
      %2595 = sbr.rel (%p2593) target = $region96
    $region95: #{matting_net_forward.1} parent=5 // pred_region
      %s2596 = ssub.s32 %s24, 2
      // Predicated region
      $region97: #{matting_net_forward.1} parent=95 // pred_check
        %p2597 = pneg %p373
      $region98: #{matting_net_forward.1} parent=95 // pred_check_branch
        %2599 = sbr.rel (%p2597) target = $region100
      $region99: #{matting_net_forward.1} parent=95 // pred_region
        %p2600 = scmp.lt.s32.totalorder %s30, 1
        %s2601 = scalar_select %p2600, %s30, 1
        %s2602 = smul.addr %s2601, 2
        %s2603 = scalar_lea.vmem %s15, %s2602
      $region100: #{matting_net_forward.1} parent=95 // pred_fallthru
        _
      // Predicated region
      $region101: #{matting_net_forward.1} parent=95 // pred_check
        %p2604 = pneg %p399
      $region102: #{matting_net_forward.1} parent=95 // pred_check_branch
        %2606 = sbr.rel (%p2604) target = $region104
      $region103: #{matting_net_forward.1} parent=95 // pred_region
        %p2607 = scmp.lt.s32.totalorder %s30, 1
        %s2608 = scalar_select %p2607, %s30, 1
        %s2609 = smul.addr %s2608, 2
        %s2610 = smul.addr %s2609, 4
        %s2611 = scalar_lea.vmem %s16, %s2610
      $region104: #{matting_net_forward.1} parent=95 // pred_fallthru
        _
      // Predicated region
      $region105: #{matting_net_forward.1} parent=95 // pred_check
        %p2612 = pneg %p425
      $region106: #{matting_net_forward.1} parent=95 // pred_check_branch
        %2614 = sbr.rel (%p2612) target = $region108
      $region107: #{matting_net_forward.1} parent=95 // pred_region
        %p2615 = scmp.lt.s32.totalorder %s30, 1
        %s2616 = scalar_select %p2615, %s30, 1
        %s2617 = smul.addr %s2616, 2
        %s2618 = scalar_lea.vmem %s17, %s2617
      $region108: #{matting_net_forward.1} parent=95 // pred_fallthru
        _
    $region96: #{matting_net_forward.1} parent=5 // pred_fallthru
      _
  $region6: #{matting_net_forward.1} parent=0 // loop_footer
    %s28 = sadd.s32 1, %s24
  $region7: #{matting_net_forward.1} parent=0 // loop_footer_branch
    %23 = sbr.rel target = $region3
  $region8: #{matting_net_forward.1} parent=0 // loop_exit
    _

</llo_original>
